<compile_context>
chip_gen: v7x
topology: tpu7x:2x2x1
jax: 0.10.0
libtpu: 0.0.40
codegen_flags: <defaults>
</compile_context>

<pallas_src>
import functools

import jax
import jax.numpy as jnp
from jax.experimental import pallas as pl
from jax.experimental.pallas import tpu as pltpu


def _gate_activations(gates, H):
    """PyTorch LSTMCell gate order (i, f, g, o). Activations computed on the
    full (B, 4H) tensor (2 EUP ops per cell), then sliced into H-lane chunks."""
    sig = jax.nn.sigmoid(gates)
    th = jnp.tanh(gates)
    i = sig[:, 0 * H:1 * H]
    f = sig[:, 1 * H:2 * H]
    g = th[:, 2 * H:3 * H]
    o = sig[:, 3 * H:4 * H]
    return i, f, g, o


def stacked_lstm_kernel(
    x_ref,       # (T*B, n_in)    time-major flattened input (row = t*B + b)
    w_ih1_ref,   # (n_in, 4*H1)
    w_hh1_ref,   # (H1, 4*H1)
    b1_ref,      # (1, 4*H1)      (= b_ih1 + b_hh1)
    w2_ref,      # (H1+H2, 4*H2)  fused [w_ih2; w_hh2]
    b2_ref,      # (1, 4*H2)      (= b_ih2 + b_hh2)
    w_lin_ref,   # (H2, n_in)
    b_lin_ref,   # (1, n_in)
    out_ref,     # (T*B, n_in)    time-major flattened output (row = t*B + b)
    h2_buf,      # VMEM scratch (T*B, H2): staged h_t2 for the hoisted Linear
    *,
    B,
    T,
):
    H1 = w_hh1_ref.shape[0]
    H2 = w_lin_ref.shape[0]

    # Hoisted weight loads / bias broadcast (not re-emitted per unrolled step).
    w_hh1 = w_hh1_ref[...]
    w2 = w2_ref[...]
    b2 = jnp.broadcast_to(b2_ref[...], (B, 4 * H2))

    # Layer-1 input projection for every timestep at once, bias folded in.
    x_proj = (
        jnp.dot(x_ref[...], w_ih1_ref[...], preferred_element_type=jnp.float32)
        + b1_ref[...]
    )  # (T*B, 4*H1)

    # Zero-initialized recurrent state (matches torch.zeros in forward).
    h_t = jnp.zeros((B, H1), jnp.float32)
    c_t = jnp.zeros((B, H1), jnp.float32)
    h_t2 = jnp.zeros((B, H2), jnp.float32)
    c_t2 = jnp.zeros((B, H2), jnp.float32)

    # Sequential recurrence over time (T small and static -> full unroll).
    # TODO(synk): switch to lax.fori_loop carrying (h,c,h2,c2) if T grows >~16.
    for t in range(T):
        # ---- layer 1 (input projection precomputed above) ----
        gates1 = x_proj[t * B:(t + 1) * B, :] + jnp.dot(
            h_t, w_hh1, preferred_element_type=jnp.float32)
        i1, f1, g1, o1 = _gate_activations(gates1, H1)
        c_t = f1 * c_t + i1 * g1
        h_t = o1 * jnp.tanh(c_t)
        # dropout (eval mode) == identity on h_t, c_t

        # ---- layer 2 (single fused ih/hh matmul) ----
        gates2 = jnp.dot(
            jnp.concatenate([h_t, h_t2], axis=1), w2,
            preferred_element_type=jnp.float32) + b2
        i2, f2, g2, o2 = _gate_activations(gates2, H2)
        c_t2 = f2 * c_t2 + i2 * g2
        h_t2 = o2 * jnp.tanh(c_t2)
        # dropout (eval mode) == identity on h_t2, c_t2

        # Stage h_t2; the Linear head is applied once after the loop.
        h2_buf[t * B:(t + 1) * B, :] = h_t2

    # Hoisted output Linear: one matmul + one contiguous store.
    out_ref[...] = (
        jnp.dot(h2_buf[...], w_lin_ref[...], preferred_element_type=jnp.float32)
        + b_lin_ref[...]
    )


def stacked_lstm_forward(x, params):
    """x: (B, T, n_in) f32. Returns (B, T*n_in) f32 (== torch.cat(outputs, 1))."""
    B, T, n_in = x.shape
    H2 = params["w_lin"].shape[0]

    # Layout plumbing outside the kernel: time-major flatten of the input and
    # pre-stacking of the fused layer-2 weight.
    x_tm = x.transpose(1, 0, 2).reshape(T * B, n_in)
    w2 = jnp.concatenate([params["w_ih2"], params["w_hh2"]], axis=0)

    vmem = pl.BlockSpec(memory_space=pltpu.MemorySpace.VMEM)
    args = (
        x_tm,
        params["w_ih1"], params["w_hh1"], params["b1"],
        w2, params["b2"],
        params["w_lin"], params["b_lin"],
    )
    out_tm = pl.pallas_call(
        functools.partial(stacked_lstm_kernel, B=B, T=T),
        out_shape=jax.ShapeDtypeStruct((T * B, n_in), jnp.float32),
        in_specs=[vmem] * len(args),
        out_specs=vmem,
        scratch_shapes=[pltpu.VMEM((T * B, H2), jnp.float32)],
    )(*args)
    # (T*B, n_in) time-major -> (B, T*n_in), matching torch.cat(outputs, dim=1).
    return out_tm.reshape(T, B, n_in).transpose(1, 0, 2).reshape(B, T * n_in)


def init_params(key, n_inputs, hidden1, hidden2):
    """Deterministic init, PyTorch-style U(-1/sqrt(H), 1/sqrt(H))."""
    ks = jax.random.split(key, 12)

    def u(k, shape, bound):
        return jax.random.uniform(k, shape, jnp.float32, -bound, bound)

    b1 = 1.0 / jnp.sqrt(hidden1)
    b2 = 1.0 / jnp.sqrt(hidden2)
    params = {
        # LSTMCell 1: PyTorch stores (4H, in) / (4H, H); we pre-transpose.
        "w_ih1": u(ks[0], (n_inputs, 4 * hidden1), b1),
        "w_hh1": u(ks[1], (hidden1, 4 * hidden1), b1),
        "b1": (u(ks[2], (1, 4 * hidden1), b1) + u(ks[3], (1, 4 * hidden1), b1)),
        # LSTMCell 2
        "w_ih2": u(ks[4], (hidden1, 4 * hidden2), b2),
        "w_hh2": u(ks[5], (hidden2, 4 * hidden2), b2),
        "b2": (u(ks[6], (1, 4 * hidden2), b2) + u(ks[7], (1, 4 * hidden2), b2)),
        # Linear(hidden2 -> n_inputs)
        "w_lin": u(ks[8], (hidden2, n_inputs), b2),
        "b_lin": u(ks[9], (1, n_inputs), b2),
    }
    return params


if __name__ == "__main__":
    # Small shapes consistent with the module's forward semantics.
    batch, seq, n_inputs = 2, 8, 6
    hidden1 = hidden2 = 32

    key = jax.random.PRNGKey(0)
    k_x, k_p = jax.random.split(key)
    x = jax.random.normal(k_x, (batch, seq, n_inputs), jnp.float32)
    params = init_params(k_p, n_inputs, hidden1, hidden2)

    out = stacked_lstm_forward(x, params)
    out = jax.block_until_ready(out)
    assert out.shape == (batch, seq * n_inputs), out.shape
    print("KERNEL_OK")
</pallas_src>

<mosaic_0001>
module attributes {stable_mosaic.version = 11 : i64} {
  func.func @stacked_lstm_kernel(%arg0: memref<16x6xf32, #tpu.memory_space<vmem>>, %arg1: memref<6x128xf32, #tpu.memory_space<vmem>>, %arg2: memref<32x128xf32, #tpu.memory_space<vmem>>, %arg3: memref<1x128xf32, #tpu.memory_space<vmem>>, %arg4: memref<64x128xf32, #tpu.memory_space<vmem>>, %arg5: memref<1x128xf32, #tpu.memory_space<vmem>>, %arg6: memref<32x6xf32, #tpu.memory_space<vmem>>, %arg7: memref<1x6xf32, #tpu.memory_space<vmem>>, %arg8: memref<16x6xf32, #tpu.memory_space<vmem>>, %arg9: memref<16x32xf32, #tpu.memory_space<vmem>>) attributes {dimension_semantics = [], scalar_prefetch = 0 : i64, scratch_operands = 1 : i64, tpu.core_type = #tpu.core_type<tc>} {
    %c0 = arith.constant 0 : index
    %c0_0 = arith.constant 0 : index
    %0 = vector.load %arg2[%c0, %c0_0] : memref<32x128xf32, #tpu.memory_space<vmem>>, vector<32x128xf32>
    %c0_1 = arith.constant 0 : index
    %c0_2 = arith.constant 0 : index
    %1 = vector.load %arg4[%c0_1, %c0_2] : memref<64x128xf32, #tpu.memory_space<vmem>>, vector<64x128xf32>
    %c0_3 = arith.constant 0 : index
    %c0_4 = arith.constant 0 : index
    %2 = vector.load %arg5[%c0_3, %c0_4] : memref<1x128xf32, #tpu.memory_space<vmem>>, vector<1x128xf32>
    %3 = vector.shape_cast %2 : vector<1x128xf32> to vector<1x128xf32>
    %4 = vector.broadcast %3 : vector<1x128xf32> to vector<2x128xf32>
    %c0_5 = arith.constant 0 : index
    %c0_6 = arith.constant 0 : index
    %5 = vector.load %arg0[%c0_5, %c0_6] : memref<16x6xf32, #tpu.memory_space<vmem>>, vector<16x6xf32>
    %c0_7 = arith.constant 0 : index
    %c0_8 = arith.constant 0 : index
    %6 = vector.load %arg1[%c0_7, %c0_8] : memref<6x128xf32, #tpu.memory_space<vmem>>, vector<6x128xf32>
    %cst = arith.constant dense<0.000000e+00> : vector<16x128xf32>
    %7 = tpu.matmul %5, %6, %cst {dimension_numbers = #tpu.dot_dimension_numbers<[1], [0], [0], [1], [0, 0, 1, 1], [], []>} : vector<16x6xf32>, vector<6x128xf32>, vector<16x128xf32> -> vector<16x128xf32>
    %c0_9 = arith.constant 0 : index
    %c0_10 = arith.constant 0 : index
    %8 = vector.load %arg3[%c0_9, %c0_10] : memref<1x128xf32, #tpu.memory_space<vmem>>, vector<1x128xf32>
    %9 = vector.broadcast %8 : vector<1x128xf32> to vector<16x128xf32>
    %10 = arith.addf %7, %9 : vector<16x128xf32>
    %cst_11 = arith.constant 0.000000e+00 : f32
    %11 = vector.broadcast %cst_11 : f32 to vector<2x32xf32>
    %cst_12 = arith.constant 0.000000e+00 : f32
    %12 = vector.broadcast %cst_12 : f32 to vector<2x32xf32>
    %cst_13 = arith.constant 0.000000e+00 : f32
    %13 = vector.broadcast %cst_13 : f32 to vector<2x32xf32>
    %cst_14 = arith.constant 0.000000e+00 : f32
    %14 = vector.broadcast %cst_14 : f32 to vector<2x32xf32>
    %15 = vector.extract_strided_slice %10 {offsets = [0, 0], sizes = [2, 128], strides = [1, 1]} : vector<16x128xf32> to vector<2x128xf32>
    %cst_15 = arith.constant dense<0.000000e+00> : vector<2x128xf32>
    %16 = tpu.matmul %11, %0, %cst_15 {dimension_numbers = #tpu.dot_dimension_numbers<[1], [0], [0], [1], [0, 0, 1, 1], [], []>} : vector<2x32xf32>, vector<32x128xf32>, vector<2x128xf32> -> vector<2x128xf32>
    %17 = arith.addf %15, %16 : vector<2x128xf32>
    %18 = arith.negf %17 : vector<2x128xf32>
    %19 = math.exp %18 : vector<2x128xf32>
    %cst_16 = arith.constant 1.000000e+00 : f32
    %20 = vector.broadcast %cst_16 : f32 to vector<2x128xf32>
    %21 = arith.addf %20, %19 : vector<2x128xf32>
    %22 = arith.divf %20, %21 : vector<2x128xf32>
    %23 = math.tanh %17 : vector<2x128xf32>
    %24 = vector.extract_strided_slice %22 {offsets = [0, 0], sizes = [2, 32], strides = [1, 1]} : vector<2x128xf32> to vector<2x32xf32>
    %25 = vector.extract_strided_slice %22 {offsets = [0, 32], sizes = [2, 32], strides = [1, 1]} : vector<2x128xf32> to vector<2x32xf32>
    %26 = vector.extract_strided_slice %23 {offsets = [0, 64], sizes = [2, 32], strides = [1, 1]} : vector<2x128xf32> to vector<2x32xf32>
    %27 = vector.extract_strided_slice %22 {offsets = [0, 96], sizes = [2, 32], strides = [1, 1]} : vector<2x128xf32> to vector<2x32xf32>
    %28 = arith.mulf %25, %12 : vector<2x32xf32>
    %29 = arith.mulf %24, %26 : vector<2x32xf32>
    %30 = arith.addf %28, %29 : vector<2x32xf32>
    %31 = math.tanh %30 : vector<2x32xf32>
    %32 = arith.mulf %27, %31 : vector<2x32xf32>
    %33 = tpu.concatenate %32, %13 in 1 : vector<2x32xf32>, vector<2x32xf32> -> vector<2x64xf32>
    %cst_17 = arith.constant dense<0.000000e+00> : vector<2x128xf32>
    %34 = tpu.matmul %33, %1, %cst_17 {dimension_numbers = #tpu.dot_dimension_numbers<[1], [0], [0], [1], [0, 0, 1, 1], [], []>} : vector<2x64xf32>, vector<64x128xf32>, vector<2x128xf32> -> vector<2x128xf32>
    %35 = arith.addf %34, %4 : vector<2x128xf32>
    %36 = arith.negf %35 : vector<2x128xf32>
    %37 = math.exp %36 : vector<2x128xf32>
    %cst_18 = arith.constant 1.000000e+00 : f32
    %38 = vector.broadcast %cst_18 : f32 to vector<2x128xf32>
    %39 = arith.addf %38, %37 : vector<2x128xf32>
    %40 = arith.divf %38, %39 : vector<2x128xf32>
    %41 = math.tanh %35 : vector<2x128xf32>
    %42 = vector.extract_strided_slice %40 {offsets = [0, 0], sizes = [2, 32], strides = [1, 1]} : vector<2x128xf32> to vector<2x32xf32>
    %43 = vector.extract_strided_slice %40 {offsets = [0, 32], sizes = [2, 32], strides = [1, 1]} : vector<2x128xf32> to vector<2x32xf32>
    %44 = vector.extract_strided_slice %41 {offsets = [0, 64], sizes = [2, 32], strides = [1, 1]} : vector<2x128xf32> to vector<2x32xf32>
    %45 = vector.extract_strided_slice %40 {offsets = [0, 96], sizes = [2, 32], strides = [1, 1]} : vector<2x128xf32> to vector<2x32xf32>
    %46 = arith.mulf %43, %14 : vector<2x32xf32>
    %47 = arith.mulf %42, %44 : vector<2x32xf32>
    %48 = arith.addf %46, %47 : vector<2x32xf32>
    %49 = math.tanh %48 : vector<2x32xf32>
    %50 = arith.mulf %45, %49 : vector<2x32xf32>
    %c0_19 = arith.constant 0 : index
    %c0_20 = arith.constant 0 : index
    %51 = vector.load %arg9[%c0_19, %c0_20] : memref<16x32xf32, #tpu.memory_space<vmem>>, vector<2x32xf32>
    tpu.vector_store %arg9[%c0_19, %c0_20], %50 {strides = array<i32>} : memref<16x32xf32, #tpu.memory_space<vmem>>, vector<2x32xf32>,
    %52 = vector.extract_strided_slice %10 {offsets = [2, 0], sizes = [2, 128], strides = [1, 1]} : vector<16x128xf32> to vector<2x128xf32>
    %cst_21 = arith.constant dense<0.000000e+00> : vector<2x128xf32>
    %53 = tpu.matmul %32, %0, %cst_21 {dimension_numbers = #tpu.dot_dimension_numbers<[1], [0], [0], [1], [0, 0, 1, 1], [], []>} : vector<2x32xf32>, vector<32x128xf32>, vector<2x128xf32> -> vector<2x128xf32>
    %54 = arith.addf %52, %53 : vector<2x128xf32>
    %55 = arith.negf %54 : vector<2x128xf32>
    %56 = math.exp %55 : vector<2x128xf32>
    %cst_22 = arith.constant 1.000000e+00 : f32
    %57 = vector.broadcast %cst_22 : f32 to vector<2x128xf32>
    %58 = arith.addf %57, %56 : vector<2x128xf32>
    %59 = arith.divf %57, %58 : vector<2x128xf32>
    %60 = math.tanh %54 : vector<2x128xf32>
    %61 = vector.extract_strided_slice %59 {offsets = [0, 0], sizes = [2, 32], strides = [1, 1]} : vector<2x128xf32> to vector<2x32xf32>
    %62 = vector.extract_strided_slice %59 {offsets = [0, 32], sizes = [2, 32], strides = [1, 1]} : vector<2x128xf32> to vector<2x32xf32>
    %63 = vector.extract_strided_slice %60 {offsets = [0, 64], sizes = [2, 32], strides = [1, 1]} : vector<2x128xf32> to vector<2x32xf32>
    %64 = vector.extract_strided_slice %59 {offsets = [0, 96], sizes = [2, 32], strides = [1, 1]} : vector<2x128xf32> to vector<2x32xf32>
    %65 = arith.mulf %62, %30 : vector<2x32xf32>
    %66 = arith.mulf %61, %63 : vector<2x32xf32>
    %67 = arith.addf %65, %66 : vector<2x32xf32>
    %68 = math.tanh %67 : vector<2x32xf32>
    %69 = arith.mulf %64, %68 : vector<2x32xf32>
    %70 = tpu.concatenate %69, %50 in 1 : vector<2x32xf32>, vector<2x32xf32> -> vector<2x64xf32>
    %cst_23 = arith.constant dense<0.000000e+00> : vector<2x128xf32>
    %71 = tpu.matmul %70, %1, %cst_23 {dimension_numbers = #tpu.dot_dimension_numbers<[1], [0], [0], [1], [0, 0, 1, 1], [], []>} : vector<2x64xf32>, vector<64x128xf32>, vector<2x128xf32> -> vector<2x128xf32>
    %72 = arith.addf %71, %4 : vector<2x128xf32>
    %73 = arith.negf %72 : vector<2x128xf32>
    %74 = math.exp %73 : vector<2x128xf32>
    %cst_24 = arith.constant 1.000000e+00 : f32
    %75 = vector.broadcast %cst_24 : f32 to vector<2x128xf32>
    %76 = arith.addf %75, %74 : vector<2x128xf32>
    %77 = arith.divf %75, %76 : vector<2x128xf32>
    %78 = math.tanh %72 : vector<2x128xf32>
    %79 = vector.extract_strided_slice %77 {offsets = [0, 0], sizes = [2, 32], strides = [1, 1]} : vector<2x128xf32> to vector<2x32xf32>
    %80 = vector.extract_strided_slice %77 {offsets = [0, 32], sizes = [2, 32], strides = [1, 1]} : vector<2x128xf32> to vector<2x32xf32>
    %81 = vector.extract_strided_slice %78 {offsets = [0, 64], sizes = [2, 32], strides = [1, 1]} : vector<2x128xf32> to vector<2x32xf32>
    %82 = vector.extract_strided_slice %77 {offsets = [0, 96], sizes = [2, 32], strides = [1, 1]} : vector<2x128xf32> to vector<2x32xf32>
    %83 = arith.mulf %80, %48 : vector<2x32xf32>
    %84 = arith.mulf %79, %81 : vector<2x32xf32>
    %85 = arith.addf %83, %84 : vector<2x32xf32>
    %86 = math.tanh %85 : vector<2x32xf32>
    %87 = arith.mulf %82, %86 : vector<2x32xf32>
    %c2 = arith.constant 2 : index
    %c0_25 = arith.constant 0 : index
    %88 = vector.load %arg9[%c2, %c0_25] : memref<16x32xf32, #tpu.memory_space<vmem>>, vector<2x32xf32>
    tpu.vector_store %arg9[%c2, %c0_25], %87 {strides = array<i32>} : memref<16x32xf32, #tpu.memory_space<vmem>>, vector<2x32xf32>,
    %89 = vector.extract_strided_slice %10 {offsets = [4, 0], sizes = [2, 128], strides = [1, 1]} : vector<16x128xf32> to vector<2x128xf32>
    %cst_26 = arith.constant dense<0.000000e+00> : vector<2x128xf32>
    %90 = tpu.matmul %69, %0, %cst_26 {dimension_numbers = #tpu.dot_dimension_numbers<[1], [0], [0], [1], [0, 0, 1, 1], [], []>} : vector<2x32xf32>, vector<32x128xf32>, vector<2x128xf32> -> vector<2x128xf32>
    %91 = arith.addf %89, %90 : vector<2x128xf32>
    %92 = arith.negf %91 : vector<2x128xf32>
    %93 = math.exp %92 : vector<2x128xf32>
    %cst_27 = arith.constant 1.000000e+00 : f32
    %94 = vector.broadcast %cst_27 : f32 to vector<2x128xf32>
    %95 = arith.addf %94, %93 : vector<2x128xf32>
    %96 = arith.divf %94, %95 : vector<2x128xf32>
    %97 = math.tanh %91 : vector<2x128xf32>
    %98 = vector.extract_strided_slice %96 {offsets = [0, 0], sizes = [2, 32], strides = [1, 1]} : vector<2x128xf32> to vector<2x32xf32>
    %99 = vector.extract_strided_slice %96 {offsets = [0, 32], sizes = [2, 32], strides = [1, 1]} : vector<2x128xf32> to vector<2x32xf32>
    %100 = vector.extract_strided_slice %97 {offsets = [0, 64], sizes = [2, 32], strides = [1, 1]} : vector<2x128xf32> to vector<2x32xf32>
    %101 = vector.extract_strided_slice %96 {offsets = [0, 96], sizes = [2, 32], strides = [1, 1]} : vector<2x128xf32> to vector<2x32xf32>
    %102 = arith.mulf %99, %67 : vector<2x32xf32>
    %103 = arith.mulf %98, %100 : vector<2x32xf32>
    %104 = arith.addf %102, %103 : vector<2x32xf32>
    %105 = math.tanh %104 : vector<2x32xf32>
    %106 = arith.mulf %101, %105 : vector<2x32xf32>
    %107 = tpu.concatenate %106, %87 in 1 : vector<2x32xf32>, vector<2x32xf32> -> vector<2x64xf32>
    %cst_28 = arith.constant dense<0.000000e+00> : vector<2x128xf32>
    %108 = tpu.matmul %107, %1, %cst_28 {dimension_numbers = #tpu.dot_dimension_numbers<[1], [0], [0], [1], [0, 0, 1, 1], [], []>} : vector<2x64xf32>, vector<64x128xf32>, vector<2x128xf32> -> vector<2x128xf32>
    %109 = arith.addf %108, %4 : vector<2x128xf32>
    %110 = arith.negf %109 : vector<2x128xf32>
    %111 = math.exp %110 : vector<2x128xf32>
    %cst_29 = arith.constant 1.000000e+00 : f32
    %112 = vector.broadcast %cst_29 : f32 to vector<2x128xf32>
    %113 = arith.addf %112, %111 : vector<2x128xf32>
    %114 = arith.divf %112, %113 : vector<2x128xf32>
    %115 = math.tanh %109 : vector<2x128xf32>
    %116 = vector.extract_strided_slice %114 {offsets = [0, 0], sizes = [2, 32], strides = [1, 1]} : vector<2x128xf32> to vector<2x32xf32>
    %117 = vector.extract_strided_slice %114 {offsets = [0, 32], sizes = [2, 32], strides = [1, 1]} : vector<2x128xf32> to vector<2x32xf32>
    %118 = vector.extract_strided_slice %115 {offsets = [0, 64], sizes = [2, 32], strides = [1, 1]} : vector<2x128xf32> to vector<2x32xf32>
    %119 = vector.extract_strided_slice %114 {offsets = [0, 96], sizes = [2, 32], strides = [1, 1]} : vector<2x128xf32> to vector<2x32xf32>
    %120 = arith.mulf %117, %85 : vector<2x32xf32>
    %121 = arith.mulf %116, %118 : vector<2x32xf32>
    %122 = arith.addf %120, %121 : vector<2x32xf32>
    %123 = math.tanh %122 : vector<2x32xf32>
    %124 = arith.mulf %119, %123 : vector<2x32xf32>
    %c4 = arith.constant 4 : index
    %c0_30 = arith.constant 0 : index
    %125 = vector.load %arg9[%c4, %c0_30] : memref<16x32xf32, #tpu.memory_space<vmem>>, vector<2x32xf32>
    tpu.vector_store %arg9[%c4, %c0_30], %124 {strides = array<i32>} : memref<16x32xf32, #tpu.memory_space<vmem>>, vector<2x32xf32>,
    %126 = vector.extract_strided_slice %10 {offsets = [6, 0], sizes = [2, 128], strides = [1, 1]} : vector<16x128xf32> to vector<2x128xf32>
    %cst_31 = arith.constant dense<0.000000e+00> : vector<2x128xf32>
    %127 = tpu.matmul %106, %0, %cst_31 {dimension_numbers = #tpu.dot_dimension_numbers<[1], [0], [0], [1], [0, 0, 1, 1], [], []>} : vector<2x32xf32>, vector<32x128xf32>, vector<2x128xf32> -> vector<2x128xf32>
    %128 = arith.addf %126, %127 : vector<2x128xf32>
    %129 = arith.negf %128 : vector<2x128xf32>
    %130 = math.exp %129 : vector<2x128xf32>
    %cst_32 = arith.constant 1.000000e+00 : f32
    %131 = vector.broadcast %cst_32 : f32 to vector<2x128xf32>
    %132 = arith.addf %131, %130 : vector<2x128xf32>
    %133 = arith.divf %131, %132 : vector<2x128xf32>
    %134 = math.tanh %128 : vector<2x128xf32>
    %135 = vector.extract_strided_slice %133 {offsets = [0, 0], sizes = [2, 32], strides = [1, 1]} : vector<2x128xf32> to vector<2x32xf32>
    %136 = vector.extract_strided_slice %133 {offsets = [0, 32], sizes = [2, 32], strides = [1, 1]} : vector<2x128xf32> to vector<2x32xf32>
    %137 = vector.extract_strided_slice %134 {offsets = [0, 64], sizes = [2, 32], strides = [1, 1]} : vector<2x128xf32> to vector<2x32xf32>
    %138 = vector.extract_strided_slice %133 {offsets = [0, 96], sizes = [2, 32], strides = [1, 1]} : vector<2x128xf32> to vector<2x32xf32>
    %139 = arith.mulf %136, %104 : vector<2x32xf32>
    %140 = arith.mulf %135, %137 : vector<2x32xf32>
    %141 = arith.addf %139, %140 : vector<2x32xf32>
    %142 = math.tanh %141 : vector<2x32xf32>
    %143 = arith.mulf %138, %142 : vector<2x32xf32>
    %144 = tpu.concatenate %143, %124 in 1 : vector<2x32xf32>, vector<2x32xf32> -> vector<2x64xf32>
    %cst_33 = arith.constant dense<0.000000e+00> : vector<2x128xf32>
    %145 = tpu.matmul %144, %1, %cst_33 {dimension_numbers = #tpu.dot_dimension_numbers<[1], [0], [0], [1], [0, 0, 1, 1], [], []>} : vector<2x64xf32>, vector<64x128xf32>, vector<2x128xf32> -> vector<2x128xf32>
    %146 = arith.addf %145, %4 : vector<2x128xf32>
    %147 = arith.negf %146 : vector<2x128xf32>
    %148 = math.exp %147 : vector<2x128xf32>
    %cst_34 = arith.constant 1.000000e+00 : f32
    %149 = vector.broadcast %cst_34 : f32 to vector<2x128xf32>
    %150 = arith.addf %149, %148 : vector<2x128xf32>
    %151 = arith.divf %149, %150 : vector<2x128xf32>
    %152 = math.tanh %146 : vector<2x128xf32>
    %153 = vector.extract_strided_slice %151 {offsets = [0, 0], sizes = [2, 32], strides = [1, 1]} : vector<2x128xf32> to vector<2x32xf32>
    %154 = vector.extract_strided_slice %151 {offsets = [0, 32], sizes = [2, 32], strides = [1, 1]} : vector<2x128xf32> to vector<2x32xf32>
    %155 = vector.extract_strided_slice %152 {offsets = [0, 64], sizes = [2, 32], strides = [1, 1]} : vector<2x128xf32> to vector<2x32xf32>
    %156 = vector.extract_strided_slice %151 {offsets = [0, 96], sizes = [2, 32], strides = [1, 1]} : vector<2x128xf32> to vector<2x32xf32>
    %157 = arith.mulf %154, %122 : vector<2x32xf32>
    %158 = arith.mulf %153, %155 : vector<2x32xf32>
    %159 = arith.addf %157, %158 : vector<2x32xf32>
    %160 = math.tanh %159 : vector<2x32xf32>
    %161 = arith.mulf %156, %160 : vector<2x32xf32>
    %c6 = arith.constant 6 : index
    %c0_35 = arith.constant 0 : index
    %162 = vector.load %arg9[%c6, %c0_35] : memref<16x32xf32, #tpu.memory_space<vmem>>, vector<2x32xf32>
    tpu.vector_store %arg9[%c6, %c0_35], %161 {strides = array<i32>} : memref<16x32xf32, #tpu.memory_space<vmem>>, vector<2x32xf32>,
    %163 = vector.extract_strided_slice %10 {offsets = [8, 0], sizes = [2, 128], strides = [1, 1]} : vector<16x128xf32> to vector<2x128xf32>
    %cst_36 = arith.constant dense<0.000000e+00> : vector<2x128xf32>
    %164 = tpu.matmul %143, %0, %cst_36 {dimension_numbers = #tpu.dot_dimension_numbers<[1], [0], [0], [1], [0, 0, 1, 1], [], []>} : vector<2x32xf32>, vector<32x128xf32>, vector<2x128xf32> -> vector<2x128xf32>
    %165 = arith.addf %163, %164 : vector<2x128xf32>
    %166 = arith.negf %165 : vector<2x128xf32>
    %167 = math.exp %166 : vector<2x128xf32>
    %cst_37 = arith.constant 1.000000e+00 : f32
    %168 = vector.broadcast %cst_37 : f32 to vector<2x128xf32>
    %169 = arith.addf %168, %167 : vector<2x128xf32>
    %170 = arith.divf %168, %169 : vector<2x128xf32>
    %171 = math.tanh %165 : vector<2x128xf32>
    %172 = vector.extract_strided_slice %170 {offsets = [0, 0], sizes = [2, 32], strides = [1, 1]} : vector<2x128xf32> to vector<2x32xf32>
    %173 = vector.extract_strided_slice %170 {offsets = [0, 32], sizes = [2, 32], strides = [1, 1]} : vector<2x128xf32> to vector<2x32xf32>
    %174 = vector.extract_strided_slice %171 {offsets = [0, 64], sizes = [2, 32], strides = [1, 1]} : vector<2x128xf32> to vector<2x32xf32>
    %175 = vector.extract_strided_slice %170 {offsets = [0, 96], sizes = [2, 32], strides = [1, 1]} : vector<2x128xf32> to vector<2x32xf32>
    %176 = arith.mulf %173, %141 : vector<2x32xf32>
    %177 = arith.mulf %172, %174 : vector<2x32xf32>
    %178 = arith.addf %176, %177 : vector<2x32xf32>
    %179 = math.tanh %178 : vector<2x32xf32>
    %180 = arith.mulf %175, %179 : vector<2x32xf32>
    %181 = tpu.concatenate %180, %161 in 1 : vector<2x32xf32>, vector<2x32xf32> -> vector<2x64xf32>
    %cst_38 = arith.constant dense<0.000000e+00> : vector<2x128xf32>
    %182 = tpu.matmul %181, %1, %cst_38 {dimension_numbers = #tpu.dot_dimension_numbers<[1], [0], [0], [1], [0, 0, 1, 1], [], []>} : vector<2x64xf32>, vector<64x128xf32>, vector<2x128xf32> -> vector<2x128xf32>
    %183 = arith.addf %182, %4 : vector<2x128xf32>
    %184 = arith.negf %183 : vector<2x128xf32>
    %185 = math.exp %184 : vector<2x128xf32>
    %cst_39 = arith.constant 1.000000e+00 : f32
    %186 = vector.broadcast %cst_39 : f32 to vector<2x128xf32>
    %187 = arith.addf %186, %185 : vector<2x128xf32>
    %188 = arith.divf %186, %187 : vector<2x128xf32>
    %189 = math.tanh %183 : vector<2x128xf32>
    %190 = vector.extract_strided_slice %188 {offsets = [0, 0], sizes = [2, 32], strides = [1, 1]} : vector<2x128xf32> to vector<2x32xf32>
    %191 = vector.extract_strided_slice %188 {offsets = [0, 32], sizes = [2, 32], strides = [1, 1]} : vector<2x128xf32> to vector<2x32xf32>
    %192 = vector.extract_strided_slice %189 {offsets = [0, 64], sizes = [2, 32], strides = [1, 1]} : vector<2x128xf32> to vector<2x32xf32>
    %193 = vector.extract_strided_slice %188 {offsets = [0, 96], sizes = [2, 32], strides = [1, 1]} : vector<2x128xf32> to vector<2x32xf32>
    %194 = arith.mulf %191, %159 : vector<2x32xf32>
    %195 = arith.mulf %190, %192 : vector<2x32xf32>
    %196 = arith.addf %194, %195 : vector<2x32xf32>
    %197 = math.tanh %196 : vector<2x32xf32>
    %198 = arith.mulf %193, %197 : vector<2x32xf32>
    %c8 = arith.constant 8 : index
    %c0_40 = arith.constant 0 : index
    %199 = vector.load %arg9[%c8, %c0_40] : memref<16x32xf32, #tpu.memory_space<vmem>>, vector<2x32xf32>
    tpu.vector_store %arg9[%c8, %c0_40], %198 {strides = array<i32>} : memref<16x32xf32, #tpu.memory_space<vmem>>, vector<2x32xf32>,
    %200 = vector.extract_strided_slice %10 {offsets = [10, 0], sizes = [2, 128], strides = [1, 1]} : vector<16x128xf32> to vector<2x128xf32>
    %cst_41 = arith.constant dense<0.000000e+00> : vector<2x128xf32>
    %201 = tpu.matmul %180, %0, %cst_41 {dimension_numbers = #tpu.dot_dimension_numbers<[1], [0], [0], [1], [0, 0, 1, 1], [], []>} : vector<2x32xf32>, vector<32x128xf32>, vector<2x128xf32> -> vector<2x128xf32>
    %202 = arith.addf %200, %201 : vector<2x128xf32>
    %203 = arith.negf %202 : vector<2x128xf32>
    %204 = math.exp %203 : vector<2x128xf32>
    %cst_42 = arith.constant 1.000000e+00 : f32
    %205 = vector.broadcast %cst_42 : f32 to vector<2x128xf32>
    %206 = arith.addf %205, %204 : vector<2x128xf32>
    %207 = arith.divf %205, %206 : vector<2x128xf32>
    %208 = math.tanh %202 : vector<2x128xf32>
    %209 = vector.extract_strided_slice %207 {offsets = [0, 0], sizes = [2, 32], strides = [1, 1]} : vector<2x128xf32> to vector<2x32xf32>
    %210 = vector.extract_strided_slice %207 {offsets = [0, 32], sizes = [2, 32], strides = [1, 1]} : vector<2x128xf32> to vector<2x32xf32>
    %211 = vector.extract_strided_slice %208 {offsets = [0, 64], sizes = [2, 32], strides = [1, 1]} : vector<2x128xf32> to vector<2x32xf32>
    %212 = vector.extract_strided_slice %207 {offsets = [0, 96], sizes = [2, 32], strides = [1, 1]} : vector<2x128xf32> to vector<2x32xf32>
    %213 = arith.mulf %210, %178 : vector<2x32xf32>
    %214 = arith.mulf %209, %211 : vector<2x32xf32>
    %215 = arith.addf %213, %214 : vector<2x32xf32>
    %216 = math.tanh %215 : vector<2x32xf32>
    %217 = arith.mulf %212, %216 : vector<2x32xf32>
    %218 = tpu.concatenate %217, %198 in 1 : vector<2x32xf32>, vector<2x32xf32> -> vector<2x64xf32>
    %cst_43 = arith.constant dense<0.000000e+00> : vector<2x128xf32>
    %219 = tpu.matmul %218, %1, %cst_43 {dimension_numbers = #tpu.dot_dimension_numbers<[1], [0], [0], [1], [0, 0, 1, 1], [], []>} : vector<2x64xf32>, vector<64x128xf32>, vector<2x128xf32> -> vector<2x128xf32>
    %220 = arith.addf %219, %4 : vector<2x128xf32>
    %221 = arith.negf %220 : vector<2x128xf32>
    %222 = math.exp %221 : vector<2x128xf32>
    %cst_44 = arith.constant 1.000000e+00 : f32
    %223 = vector.broadcast %cst_44 : f32 to vector<2x128xf32>
    %224 = arith.addf %223, %222 : vector<2x128xf32>
    %225 = arith.divf %223, %224 : vector<2x128xf32>
    %226 = math.tanh %220 : vector<2x128xf32>
    %227 = vector.extract_strided_slice %225 {offsets = [0, 0], sizes = [2, 32], strides = [1, 1]} : vector<2x128xf32> to vector<2x32xf32>
    %228 = vector.extract_strided_slice %225 {offsets = [0, 32], sizes = [2, 32], strides = [1, 1]} : vector<2x128xf32> to vector<2x32xf32>
    %229 = vector.extract_strided_slice %226 {offsets = [0, 64], sizes = [2, 32], strides = [1, 1]} : vector<2x128xf32> to vector<2x32xf32>
    %230 = vector.extract_strided_slice %225 {offsets = [0, 96], sizes = [2, 32], strides = [1, 1]} : vector<2x128xf32> to vector<2x32xf32>
    %231 = arith.mulf %228, %196 : vector<2x32xf32>
    %232 = arith.mulf %227, %229 : vector<2x32xf32>
    %233 = arith.addf %231, %232 : vector<2x32xf32>
    %234 = math.tanh %233 : vector<2x32xf32>
    %235 = arith.mulf %230, %234 : vector<2x32xf32>
    %c10 = arith.constant 10 : index
    %c0_45 = arith.constant 0 : index
    %236 = vector.load %arg9[%c10, %c0_45] : memref<16x32xf32, #tpu.memory_space<vmem>>, vector<2x32xf32>
    tpu.vector_store %arg9[%c10, %c0_45], %235 {strides = array<i32>} : memref<16x32xf32, #tpu.memory_space<vmem>>, vector<2x32xf32>,
    %237 = vector.extract_strided_slice %10 {offsets = [12, 0], sizes = [2, 128], strides = [1, 1]} : vector<16x128xf32> to vector<2x128xf32>
    %cst_46 = arith.constant dense<0.000000e+00> : vector<2x128xf32>
    %238 = tpu.matmul %217, %0, %cst_46 {dimension_numbers = #tpu.dot_dimension_numbers<[1], [0], [0], [1], [0, 0, 1, 1], [], []>} : vector<2x32xf32>, vector<32x128xf32>, vector<2x128xf32> -> vector<2x128xf32>
    %239 = arith.addf %237, %238 : vector<2x128xf32>
    %240 = arith.negf %239 : vector<2x128xf32>
    %241 = math.exp %240 : vector<2x128xf32>
    %cst_47 = arith.constant 1.000000e+00 : f32
    %242 = vector.broadcast %cst_47 : f32 to vector<2x128xf32>
    %243 = arith.addf %242, %241 : vector<2x128xf32>
    %244 = arith.divf %242, %243 : vector<2x128xf32>
    %245 = math.tanh %239 : vector<2x128xf32>
    %246 = vector.extract_strided_slice %244 {offsets = [0, 0], sizes = [2, 32], strides = [1, 1]} : vector<2x128xf32> to vector<2x32xf32>
    %247 = vector.extract_strided_slice %244 {offsets = [0, 32], sizes = [2, 32], strides = [1, 1]} : vector<2x128xf32> to vector<2x32xf32>
    %248 = vector.extract_strided_slice %245 {offsets = [0, 64], sizes = [2, 32], strides = [1, 1]} : vector<2x128xf32> to vector<2x32xf32>
    %249 = vector.extract_strided_slice %244 {offsets = [0, 96], sizes = [2, 32], strides = [1, 1]} : vector<2x128xf32> to vector<2x32xf32>
    %250 = arith.mulf %247, %215 : vector<2x32xf32>
    %251 = arith.mulf %246, %248 : vector<2x32xf32>
    %252 = arith.addf %250, %251 : vector<2x32xf32>
    %253 = math.tanh %252 : vector<2x32xf32>
    %254 = arith.mulf %249, %253 : vector<2x32xf32>
    %255 = tpu.concatenate %254, %235 in 1 : vector<2x32xf32>, vector<2x32xf32> -> vector<2x64xf32>
    %cst_48 = arith.constant dense<0.000000e+00> : vector<2x128xf32>
    %256 = tpu.matmul %255, %1, %cst_48 {dimension_numbers = #tpu.dot_dimension_numbers<[1], [0], [0], [1], [0, 0, 1, 1], [], []>} : vector<2x64xf32>, vector<64x128xf32>, vector<2x128xf32> -> vector<2x128xf32>
    %257 = arith.addf %256, %4 : vector<2x128xf32>
    %258 = arith.negf %257 : vector<2x128xf32>
    %259 = math.exp %258 : vector<2x128xf32>
    %cst_49 = arith.constant 1.000000e+00 : f32
    %260 = vector.broadcast %cst_49 : f32 to vector<2x128xf32>
    %261 = arith.addf %260, %259 : vector<2x128xf32>
    %262 = arith.divf %260, %261 : vector<2x128xf32>
    %263 = math.tanh %257 : vector<2x128xf32>
    %264 = vector.extract_strided_slice %262 {offsets = [0, 0], sizes = [2, 32], strides = [1, 1]} : vector<2x128xf32> to vector<2x32xf32>
    %265 = vector.extract_strided_slice %262 {offsets = [0, 32], sizes = [2, 32], strides = [1, 1]} : vector<2x128xf32> to vector<2x32xf32>
    %266 = vector.extract_strided_slice %263 {offsets = [0, 64], sizes = [2, 32], strides = [1, 1]} : vector<2x128xf32> to vector<2x32xf32>
    %267 = vector.extract_strided_slice %262 {offsets = [0, 96], sizes = [2, 32], strides = [1, 1]} : vector<2x128xf32> to vector<2x32xf32>
    %268 = arith.mulf %265, %233 : vector<2x32xf32>
    %269 = arith.mulf %264, %266 : vector<2x32xf32>
    %270 = arith.addf %268, %269 : vector<2x32xf32>
    %271 = math.tanh %270 : vector<2x32xf32>
    %272 = arith.mulf %267, %271 : vector<2x32xf32>
    %c12 = arith.constant 12 : index
    %c0_50 = arith.constant 0 : index
    %273 = vector.load %arg9[%c12, %c0_50] : memref<16x32xf32, #tpu.memory_space<vmem>>, vector<2x32xf32>
    tpu.vector_store %arg9[%c12, %c0_50], %272 {strides = array<i32>} : memref<16x32xf32, #tpu.memory_space<vmem>>, vector<2x32xf32>,
    %274 = vector.extract_strided_slice %10 {offsets = [14, 0], sizes = [2, 128], strides = [1, 1]} : vector<16x128xf32> to vector<2x128xf32>
    %cst_51 = arith.constant dense<0.000000e+00> : vector<2x128xf32>
    %275 = tpu.matmul %254, %0, %cst_51 {dimension_numbers = #tpu.dot_dimension_numbers<[1], [0], [0], [1], [0, 0, 1, 1], [], []>} : vector<2x32xf32>, vector<32x128xf32>, vector<2x128xf32> -> vector<2x128xf32>
    %276 = arith.addf %274, %275 : vector<2x128xf32>
    %277 = arith.negf %276 : vector<2x128xf32>
    %278 = math.exp %277 : vector<2x128xf32>
    %cst_52 = arith.constant 1.000000e+00 : f32
    %279 = vector.broadcast %cst_52 : f32 to vector<2x128xf32>
    %280 = arith.addf %279, %278 : vector<2x128xf32>
    %281 = arith.divf %279, %280 : vector<2x128xf32>
    %282 = math.tanh %276 : vector<2x128xf32>
    %283 = vector.extract_strided_slice %281 {offsets = [0, 0], sizes = [2, 32], strides = [1, 1]} : vector<2x128xf32> to vector<2x32xf32>
    %284 = vector.extract_strided_slice %281 {offsets = [0, 32], sizes = [2, 32], strides = [1, 1]} : vector<2x128xf32> to vector<2x32xf32>
    %285 = vector.extract_strided_slice %282 {offsets = [0, 64], sizes = [2, 32], strides = [1, 1]} : vector<2x128xf32> to vector<2x32xf32>
    %286 = vector.extract_strided_slice %281 {offsets = [0, 96], sizes = [2, 32], strides = [1, 1]} : vector<2x128xf32> to vector<2x32xf32>
    %287 = arith.mulf %284, %252 : vector<2x32xf32>
    %288 = arith.mulf %283, %285 : vector<2x32xf32>
    %289 = arith.addf %287, %288 : vector<2x32xf32>
    %290 = math.tanh %289 : vector<2x32xf32>
    %291 = arith.mulf %286, %290 : vector<2x32xf32>
    %292 = tpu.concatenate %291, %272 in 1 : vector<2x32xf32>, vector<2x32xf32> -> vector<2x64xf32>
    %cst_53 = arith.constant dense<0.000000e+00> : vector<2x128xf32>
    %293 = tpu.matmul %292, %1, %cst_53 {dimension_numbers = #tpu.dot_dimension_numbers<[1], [0], [0], [1], [0, 0, 1, 1], [], []>} : vector<2x64xf32>, vector<64x128xf32>, vector<2x128xf32> -> vector<2x128xf32>
    %294 = arith.addf %293, %4 : vector<2x128xf32>
    %295 = arith.negf %294 : vector<2x128xf32>
    %296 = math.exp %295 : vector<2x128xf32>
    %cst_54 = arith.constant 1.000000e+00 : f32
    %297 = vector.broadcast %cst_54 : f32 to vector<2x128xf32>
    %298 = arith.addf %297, %296 : vector<2x128xf32>
    %299 = arith.divf %297, %298 : vector<2x128xf32>
    %300 = math.tanh %294 : vector<2x128xf32>
    %301 = vector.extract_strided_slice %299 {offsets = [0, 0], sizes = [2, 32], strides = [1, 1]} : vector<2x128xf32> to vector<2x32xf32>
    %302 = vector.extract_strided_slice %299 {offsets = [0, 32], sizes = [2, 32], strides = [1, 1]} : vector<2x128xf32> to vector<2x32xf32>
    %303 = vector.extract_strided_slice %300 {offsets = [0, 64], sizes = [2, 32], strides = [1, 1]} : vector<2x128xf32> to vector<2x32xf32>
    %304 = vector.extract_strided_slice %299 {offsets = [0, 96], sizes = [2, 32], strides = [1, 1]} : vector<2x128xf32> to vector<2x32xf32>
    %305 = arith.mulf %302, %270 : vector<2x32xf32>
    %306 = arith.mulf %301, %303 : vector<2x32xf32>
    %307 = arith.addf %305, %306 : vector<2x32xf32>
    %308 = math.tanh %307 : vector<2x32xf32>
    %309 = arith.mulf %304, %308 : vector<2x32xf32>
    %c14 = arith.constant 14 : index
    %c0_55 = arith.constant 0 : index
    %310 = vector.load %arg9[%c14, %c0_55] : memref<16x32xf32, #tpu.memory_space<vmem>>, vector<2x32xf32>
    tpu.vector_store %arg9[%c14, %c0_55], %309 {strides = array<i32>} : memref<16x32xf32, #tpu.memory_space<vmem>>, vector<2x32xf32>,
    %c0_56 = arith.constant 0 : index
    %c0_57 = arith.constant 0 : index
    %311 = vector.load %arg9[%c0_56, %c0_57] : memref<16x32xf32, #tpu.memory_space<vmem>>, vector<16x32xf32>
    %c0_58 = arith.constant 0 : index
    %c0_59 = arith.constant 0 : index
    %312 = vector.load %arg6[%c0_58, %c0_59] : memref<32x6xf32, #tpu.memory_space<vmem>>, vector<32x6xf32>
    %cst_60 = arith.constant dense<0.000000e+00> : vector<16x6xf32>
    %313 = tpu.matmul %311, %312, %cst_60 {dimension_numbers = #tpu.dot_dimension_numbers<[1], [0], [0], [1], [0, 0, 1, 1], [], []>} : vector<16x32xf32>, vector<32x6xf32>, vector<16x6xf32> -> vector<16x6xf32>
    %c0_61 = arith.constant 0 : index
    %c0_62 = arith.constant 0 : index
    %314 = vector.load %arg7[%c0_61, %c0_62] : memref<1x6xf32, #tpu.memory_space<vmem>>, vector<1x6xf32>
    %315 = vector.broadcast %314 : vector<1x6xf32> to vector<16x6xf32>
    %316 = arith.addf %313, %315 : vector<16x6xf32>
    %c0_63 = arith.constant 0 : index
    %c0_64 = arith.constant 0 : index
    %317 = vector.load %arg8[%c0_63, %c0_64] : memref<16x6xf32, #tpu.memory_space<vmem>>, vector<16x6xf32>
    tpu.vector_store %arg8[%c0_63, %c0_64], %316 {strides = array<i32>} : memref<16x6xf32, #tpu.memory_space<vmem>>, vector<16x6xf32>,
    return
  }
}

</mosaic_0001>

<llo_original>
// kernel: tpu_custom_call.1
$region0: #{tpu_custom_call.1}
  #allocation0 [shape = 'u32[]', space=smem, size = 0x4, offset = 0x4, fixed_abs, tag = 'smem constant byte address 0x4 - core index']
  #allocation1 [shape = 'u32[144,128]{1,0:T(1,128)}', space=vmem, size = 0x12000, scoped, tag = 'internal scratch']
  #allocation2 [shape = 'f32[16,32]{1,0:T(8,128)}', space=vmem, size = 0x2000, scoped, tag = 'scratch operand']
  %s0 = inlined_call_operand.vmem [shape: f32[16,6], index: 0, kind: input, shape index: {}]
  %s1 = inlined_call_operand.vmem [shape: f32[6,128], index: 1, kind: input, shape index: {}]
  %s2 = inlined_call_operand.hbm [shape: f32[32,128], index: 2, kind: input, shape index: {}]
  %s3 = inlined_call_operand.vmem [shape: f32[1,128], index: 3, kind: input, shape index: {}]
  %s4 = inlined_call_operand.vmem [shape: f32[64,128], index: 4, kind: input, shape index: {}]
  %s5 = inlined_call_operand.vmem [shape: f32[1,128], index: 5, kind: input, shape index: {}]
  %s6 = inlined_call_operand.vmem [shape: f32[32,6], index: 6, kind: input, shape index: {}]
  %s7 = inlined_call_operand.vmem [shape: f32[1,6], index: 7, kind: input, shape index: {}]
  %s8 = inlined_call_operand.vmem [shape: f32[16,6], index: 8, kind: output, shape index: {}]
  %s9 = sld [smem:[#allocation0]]
  $region46: #{tpu_custom_call.1} parent=0
    _
  %s11 = ssub.s32 1, %s9
  %s12 = scalar_select 0, %s11, %s9
  $region1: #{tpu_custom_call.1} parent=0
    #allocation3 [shape = 'u8[16384]{0}', space=vmem, size = 0x4000, scoped, tag = 'input window, operand 2, single buffered']
    #allocation4 [shape = 's32[1]{0}', space=sflag, size = 0x4, scoped, tag = 'scoped memory for tpu_custom_call.1']
    %13 = vsyncpa [#allocation4], 0
    // Predicated region
    $region2: #{tpu_custom_call.1} parent=1 // pred_check
      _
    $region3: #{tpu_custom_call.1} parent=1 // pred_check_branch
      %15 = sbr.rel (0) target = $region5
    $region4: #{tpu_custom_call.1} parent=1 // pred_region
      _
    $region5: #{tpu_custom_call.1} parent=1 // pred_fallthru
      _
    // Predicated region
    $region6: #{tpu_custom_call.1} parent=1 // pred_check
      _
    $region7: #{tpu_custom_call.1} parent=1 // pred_check_branch
      %17 = sbr.rel (0) target = $region9
    $region8: #{tpu_custom_call.1} parent=1 // pred_region
      _
    $region9: #{tpu_custom_call.1} parent=1 // pred_fallthru
      _
    // Predicated region
    $region10: #{tpu_custom_call.1} parent=1 // pred_check
      _
    $region11: #{tpu_custom_call.1} parent=1 // pred_check_branch
      %19 = sbr.rel (0) target = $region13
    $region12: #{tpu_custom_call.1} parent=1 // pred_region
      %s21 = ssub.s32 512, 512
      %22 = vsyncadd [#allocation4], %s21
      %s23 = sshll.u32 [#allocation3], 4
      %s24 = int_to_ptr.vmem [resolvable:$true] %s23
      %29 = dma.hbm_to_vmem [thread:$0]  %s2, 512, %s24, [#allocation4], 128, 128, 8
    $region13: #{tpu_custom_call.1} parent=1 // pred_fallthru
      _
    // Predicated region
    $region14: #{tpu_custom_call.1} parent=1 // pred_check
      _
    $region15: #{tpu_custom_call.1} parent=1 // pred_check_branch
      %31 = sbr.rel (0) target = $region17
    $region16: #{tpu_custom_call.1} parent=1 // pred_region
      _
    $region17: #{tpu_custom_call.1} parent=1 // pred_fallthru
      _
    // Predicated region
    $region18: #{tpu_custom_call.1} parent=1 // pred_check
      _
    $region19: #{tpu_custom_call.1} parent=1 // pred_check_branch
      %33 = sbr.rel (0) target = $region21
    $region20: #{tpu_custom_call.1} parent=1 // pred_region
      _
    $region21: #{tpu_custom_call.1} parent=1 // pred_fallthru
      _
    // Predicated region
    $region22: #{tpu_custom_call.1} parent=1 // pred_check
      _
    $region23: #{tpu_custom_call.1} parent=1 // pred_check_branch
      %35 = sbr.rel (0) target = $region25
    $region24: #{tpu_custom_call.1} parent=1 // pred_region
      _
    $region25: #{tpu_custom_call.1} parent=1 // pred_fallthru
      _
    // Predicated region
    $region26: #{tpu_custom_call.1} parent=1 // pred_check
      _
    $region27: #{tpu_custom_call.1} parent=1 // pred_check_branch
      %37 = sbr.rel (0) target = $region29
    $region28: #{tpu_custom_call.1} parent=1 // pred_region
      _
    $region29: #{tpu_custom_call.1} parent=1 // pred_fallthru
      _
    // Predicated region
    $region30: #{tpu_custom_call.1} parent=1 // pred_check
      _
    $region31: #{tpu_custom_call.1} parent=1 // pred_check_branch
      %39 = sbr.rel (0) target = $region33
    $region32: #{tpu_custom_call.1} parent=1 // pred_region
      _
    $region33: #{tpu_custom_call.1} parent=1 // pred_fallthru
      _
    // Predicated region
    $region34: #{tpu_custom_call.1} parent=1 // pred_check
      _
    $region35: #{tpu_custom_call.1} parent=1 // pred_check_branch
      %41 = sbr.rel (0) target = $region37
    $region36: #{tpu_custom_call.1} parent=1 // pred_region
      %42 = dma.done [#allocation4], 512
    $region37: #{tpu_custom_call.1} parent=1 // pred_fallthru
      _
    %v43 = vld [vmem:[#allocation3] sm:$0xff]
    %v44 = vld [vmem:[#allocation3 + $0x8] sm:$0xff]
    %v45 = vld [vmem:[#allocation3 + $0x10] sm:$0xff]
    %v46 = vld [vmem:[#allocation3 + $0x18] sm:$0xff]
    %v47 = vld [vmem:[%s4] sm:$0xff]
    %v48 = vld [vmem:[%s4 + $0x8] sm:$0xff]
    %v49 = vld [vmem:[%s4 + $0x10] sm:$0xff]
    %v50 = vld [vmem:[%s4 + $0x18] sm:$0xff]
    %v51 = vld [vmem:[%s4 + $0x20] sm:$0xff]
    %v52 = vld [vmem:[%s4 + $0x28] sm:$0xff]
    %v53 = vld [vmem:[%s4 + $0x30] sm:$0xff]
    %v54 = vld [vmem:[%s4 + $0x38] sm:$0xff]
    %v55 = vld [vmem:[%s5] sm:$0x1]
    %v57 = vlaneseq
    %v58 = vshrl.u32 %v57, 7
    %v59 = vsub.s32 0, %v58
    %v60 = vrot.slane %v55, %v59
    %v62 = vld [vmem:[%s0] sm:$0xff]
    %v63 = vld [vmem:[%s0 + $0x8] sm:$0xff]
    %v64 = vld [vmem:[%s1] sm:$0x3f]
    %v65 = vld [vmem:[%s3] sm:$0x1]
    %v67 = vlaneseq
    %v68 = vshrl.u32 %v67, 7
    %v69 = vsub.s32 0, %v68
    %v70 = vrot.slane %v65, %v69
    %vm72 = vcmask 48128
    %v74 = vsel %vm72, %v62, 0
    %v77 = vsel %vm72, %v63, 0
    %vm79 = vcmask 1045504
    %v81 = vsel %vm79, %v64, 0
    %83 = vmatprep.subr.mxu0 0.0
    %84 = vmatpush1.msra.mxu0 %v81
    %85 = vmatprep.subr.mxu0 0.0
    %86 = vmatpush1.msra.mxu0 0.0
    %87 = vmatprep.subr.mxu0 0.0
    %88 = vmatpush1.msra.mxu0 0.0
    %89 = vmatprep.subr.mxu0 0.0
    %90 = vmatpush1.msra.mxu0 0.0
    %91 = vmatprep.subr.mxu0 0.0
    %92 = vmatpush1.msra.mxu0 0.0
    %93 = vmatprep.subr.mxu0 0.0
    %94 = vmatpush1.msra.mxu0 0.0
    %95 = vmatprep.subr.mxu0 0.0
    %96 = vmatpush1.msra.mxu0 0.0
    %97 = vmatprep.subr.mxu0 0.0
    %98 = vmatpush1.msra.mxu0 0.0
    %99 = vmatprep.subr.mxu0 0.0
    %100 = vmatpush1.msra.mxu0 0.0
    %101 = vmatprep.subr.mxu0 0.0
    %102 = vmatpush1.msra.mxu0 0.0
    %103 = vmatprep.subr.mxu0 0.0
    %104 = vmatpush1.msra.mxu0 0.0
    %105 = vmatprep.subr.mxu0 0.0
    %106 = vmatpush1.msra.mxu0 0.0
    %107 = vmatprep.subr.mxu0 0.0
    %108 = vmatpush1.msra.mxu0 0.0
    %109 = vmatprep.subr.mxu0 0.0
    %110 = vmatpush1.msra.mxu0 0.0
    %111 = vmatprep.subr.mxu0 0.0
    %112 = vmatpush1.msra.mxu0 0.0
    %113 = vmatprep.subr.mxu0 0.0
    %114 = vmatpush1.msra.mxu0 0.0
    %115 = vmatprep.subr.mxu0 0.0
    %116 = vmatpush1.msra.mxu0 0.0
    %117 = vmatprep.subr.mxu0 0.0
    %118 = vmatpush1.msra.mxu0 0.0
    %119 = vmatprep.subr.mxu0 0.0
    %120 = vmatpush1.msra.mxu0 0.0
    %121 = vmatprep.subr.mxu0 0.0
    %122 = vmatpush1.msra.mxu0 0.0
    %123 = vmatprep.subr.mxu0 0.0
    %124 = vmatpush1.msra.mxu0 0.0
    %125 = vmatprep.subr.mxu0 0.0
    %126 = vmatpush1.msra.mxu0 0.0
    %127 = vmatprep.subr.mxu0 0.0
    %128 = vmatpush1.msra.mxu0 0.0
    %129 = vmatprep.subr.mxu0 0.0
    %130 = vmatpush1.msra.mxu0 0.0
    %131 = vmatprep.subr.mxu0 0.0
    %132 = vmatpush1.msra.mxu0 0.0
    %133 = vmatprep.subr.mxu0 0.0
    %134 = vmatpush1.msra.mxu0 0.0
    %135 = vmatprep.subr.mxu0 0.0
    %136 = vmatpush1.msra.mxu0 0.0
    %137 = vmatprep.subr.mxu0 0.0
    %138 = vmatpush1.msra.mxu0 0.0
    %139 = vmatprep.subr.mxu0 0.0
    %140 = vmatpush1.msra.mxu0 0.0
    %141 = vmatprep.subr.mxu0 0.0
    %142 = vmatpush1.msra.mxu0 0.0
    %143 = vmatprep.subr.mxu0 0.0
    %144 = vmatpush1.msra.mxu0 0.0
    %145 = vmatprep.subr.mxu0 0.0
    %146 = vmatpush1.msra.mxu0 0.0
    %147 = vmatprep.mubr.f32.mxu0 0.0
    %148 = vmatmul.mubr.f32.gmra.mrb[0].mxu0 %v74
    %v149 = vpop.f32.mrb[0].mxu0
    %v150 = vadd.f32 %v70, %v149
    %v151 = vpop.f32.mrb[0].mxu0
    %152 = vmatprep.mubr.f32.mxu0 0.0
    %153 = vmatmul.mubr.f32.gmra.mrb[0].mxu0 %v77
    %v154 = vpop.f32.mrb[0].mxu0
    %v155 = vadd.f32 %v70, %v154
    %v156 = vpop.f32.mrb[0].mxu0
    %157 = vdwg.mxu0
    %vm158 = vcmask 261120
    %v160 = vsel %vm158, 0.0, 0
    %162 = vmatprep.subr.mxu0 0.0
    %163 = vmatpush1.msra.mxu0 %v43
    %164 = vmatprep.subr.mxu0 0.0
    %165 = vmatpush1.msra.mxu0 %v44
    %166 = vmatprep.subr.mxu0 0.0
    %167 = vmatpush1.msra.mxu0 %v45
    %168 = vmatprep.subr.mxu0 0.0
    %169 = vmatpush1.msra.mxu0 %v46
    %170 = vmatprep.subr.mxu0 0.0
    %171 = vmatpush1.msra.mxu0 0.0
    %172 = vmatprep.subr.mxu0 0.0
    %173 = vmatpush1.msra.mxu0 0.0
    %174 = vmatprep.subr.mxu0 0.0
    %175 = vmatpush1.msra.mxu0 0.0
    %176 = vmatprep.subr.mxu0 0.0
    %177 = vmatpush1.msra.mxu0 0.0
    %178 = vmatprep.subr.mxu0 0.0
    %179 = vmatpush1.msra.mxu0 0.0
    %180 = vmatprep.subr.mxu0 0.0
    %181 = vmatpush1.msra.mxu0 0.0
    %182 = vmatprep.subr.mxu0 0.0
    %183 = vmatpush1.msra.mxu0 0.0
    %184 = vmatprep.subr.mxu0 0.0
    %185 = vmatpush1.msra.mxu0 0.0
    %186 = vmatprep.subr.mxu0 0.0
    %187 = vmatpush1.msra.mxu0 0.0
    %188 = vmatprep.subr.mxu0 0.0
    %189 = vmatpush1.msra.mxu0 0.0
    %190 = vmatprep.subr.mxu0 0.0
    %191 = vmatpush1.msra.mxu0 0.0
    %192 = vmatprep.subr.mxu0 0.0
    %193 = vmatpush1.msra.mxu0 0.0
    %194 = vmatprep.subr.mxu0 0.0
    %195 = vmatpush1.msra.mxu0 0.0
    %196 = vmatprep.subr.mxu0 0.0
    %197 = vmatpush1.msra.mxu0 0.0
    %198 = vmatprep.subr.mxu0 0.0
    %199 = vmatpush1.msra.mxu0 0.0
    %200 = vmatprep.subr.mxu0 0.0
    %201 = vmatpush1.msra.mxu0 0.0
    %202 = vmatprep.subr.mxu0 0.0
    %203 = vmatpush1.msra.mxu0 0.0
    %204 = vmatprep.subr.mxu0 0.0
    %205 = vmatpush1.msra.mxu0 0.0
    %206 = vmatprep.subr.mxu0 0.0
    %207 = vmatpush1.msra.mxu0 0.0
    %208 = vmatprep.subr.mxu0 0.0
    %209 = vmatpush1.msra.mxu0 0.0
    %210 = vmatprep.subr.mxu0 0.0
    %211 = vmatpush1.msra.mxu0 0.0
    %212 = vmatprep.subr.mxu0 0.0
    %213 = vmatpush1.msra.mxu0 0.0
    %214 = vmatprep.subr.mxu0 0.0
    %215 = vmatpush1.msra.mxu0 0.0
    %216 = vmatprep.subr.mxu0 0.0
    %217 = vmatpush1.msra.mxu0 0.0
    %218 = vmatprep.subr.mxu0 0.0
    %219 = vmatpush1.msra.mxu0 0.0
    %220 = vmatprep.subr.mxu0 0.0
    %221 = vmatpush1.msra.mxu0 0.0
    %222 = vmatprep.subr.mxu0 0.0
    %223 = vmatpush1.msra.mxu0 0.0
    %224 = vmatprep.subr.mxu0 0.0
    %225 = vmatpush1.msra.mxu0 0.0
    %226 = vmatprep.mubr.f32.mxu0 0.0
    %227 = vmatmul.mubr.f32.gmra.mrb[0].mxu0 %v160
    %v228 = vpop.f32.mrb[0].mxu0
    %v229 = vadd.f32 0.0, %v228
    %v230 = vpop.f32.mrb[0].mxu0
    %231 = vdwg.mxu0
    %v232 = vadd.f32 %v150, %v229
    %v233 = vxor.u32 %v232, 2147483648
    %v234 = vmul.f32 %v233, 1.442695
    %v235 = vpow.pop %v234
    %v236 = vadd.f32 %v235, 1.0
    %v237 = vrcp.pop %v236
    %v238 = vmul.f32 1.0, %v237
    %v239 = vtanh.pop %v232
    %v240 = vmul.f32 %v238, 0.0
    %242 = vrot.lane.b32.xlu0 %v239, 64
    %v243 = vpop.permute.xlu0 %242
    %v245 = vmul.f32 %v238, %v243
    %247 = vrot.lane.b32.xlu0 %v245, 32
    %v248 = vpop.permute.xlu0 %247
    %v250 = vadd.f32 %v240, %v248
    %v251 = vtanh.pop %v250
    %253 = vrot.lane.b32.xlu0 %v251, 64
    %v254 = vpop.permute.xlu0 %253
    %v256 = vmul.f32 %v238, %v254
    %258 = vrot.lane.b32.xlu0 %v256, 32
    %v259 = vpop.permute.xlu0 %258
    %v261 = vsel %vm158, %v259, 0.0
    %vm262 = vcmask 523264
    %v264 = vsel %vm262, %v261, 0
    %266 = vmatprep.subr.mxu0 0.0
    %267 = vmatpush1.msra.mxu0 %v47
    %268 = vmatprep.subr.mxu0 0.0
    %269 = vmatpush1.msra.mxu0 %v48
    %270 = vmatprep.subr.mxu0 0.0
    %271 = vmatpush1.msra.mxu0 %v49
    %272 = vmatprep.subr.mxu0 0.0
    %273 = vmatpush1.msra.mxu0 %v50
    %274 = vmatprep.subr.mxu0 0.0
    %275 = vmatpush1.msra.mxu0 %v51
    %276 = vmatprep.subr.mxu0 0.0
    %277 = vmatpush1.msra.mxu0 %v52
    %278 = vmatprep.subr.mxu0 0.0
    %279 = vmatpush1.msra.mxu0 %v53
    %280 = vmatprep.subr.mxu0 0.0
    %281 = vmatpush1.msra.mxu0 %v54
    %282 = vmatprep.subr.mxu0 0.0
    %283 = vmatpush1.msra.mxu0 0.0
    %284 = vmatprep.subr.mxu0 0.0
    %285 = vmatpush1.msra.mxu0 0.0
    %286 = vmatprep.subr.mxu0 0.0
    %287 = vmatpush1.msra.mxu0 0.0
    %288 = vmatprep.subr.mxu0 0.0
    %289 = vmatpush1.msra.mxu0 0.0
    %290 = vmatprep.subr.mxu0 0.0
    %291 = vmatpush1.msra.mxu0 0.0
    %292 = vmatprep.subr.mxu0 0.0
    %293 = vmatpush1.msra.mxu0 0.0
    %294 = vmatprep.subr.mxu0 0.0
    %295 = vmatpush1.msra.mxu0 0.0
    %296 = vmatprep.subr.mxu0 0.0
    %297 = vmatpush1.msra.mxu0 0.0
    %298 = vmatprep.subr.mxu0 0.0
    %299 = vmatpush1.msra.mxu0 0.0
    %300 = vmatprep.subr.mxu0 0.0
    %301 = vmatpush1.msra.mxu0 0.0
    %302 = vmatprep.subr.mxu0 0.0
    %303 = vmatpush1.msra.mxu0 0.0
    %304 = vmatprep.subr.mxu0 0.0
    %305 = vmatpush1.msra.mxu0 0.0
    %306 = vmatprep.subr.mxu0 0.0
    %307 = vmatpush1.msra.mxu0 0.0
    %308 = vmatprep.subr.mxu0 0.0
    %309 = vmatpush1.msra.mxu0 0.0
    %310 = vmatprep.subr.mxu0 0.0
    %311 = vmatpush1.msra.mxu0 0.0
    %312 = vmatprep.subr.mxu0 0.0
    %313 = vmatpush1.msra.mxu0 0.0
    %314 = vmatprep.subr.mxu0 0.0
    %315 = vmatpush1.msra.mxu0 0.0
    %316 = vmatprep.subr.mxu0 0.0
    %317 = vmatpush1.msra.mxu0 0.0
    %318 = vmatprep.subr.mxu0 0.0
    %319 = vmatpush1.msra.mxu0 0.0
    %320 = vmatprep.subr.mxu0 0.0
    %321 = vmatpush1.msra.mxu0 0.0
    %322 = vmatprep.subr.mxu0 0.0
    %323 = vmatpush1.msra.mxu0 0.0
    %324 = vmatprep.subr.mxu0 0.0
    %325 = vmatpush1.msra.mxu0 0.0
    %326 = vmatprep.subr.mxu0 0.0
    %327 = vmatpush1.msra.mxu0 0.0
    %328 = vmatprep.subr.mxu0 0.0
    %329 = vmatpush1.msra.mxu0 0.0
    %330 = vmatprep.mubr.f32.mxu0 0.0
    %331 = vmatmul.mubr.f32.gmra.mrb[0].mxu0 %v264
    %v332 = vpop.f32.mrb[0].mxu0
    %v333 = vadd.f32 %v60, %v332
    %v334 = vpop.f32.mrb[0].mxu0
    %335 = vdwg.mxu0
    %v336 = vxor.u32 %v333, 2147483648
    %v337 = vmul.f32 %v336, 1.442695
    %v338 = vpow.pop %v337
    %v339 = vadd.f32 %v338, 1.0
    %v340 = vrcp.pop %v339
    %v341 = vmul.f32 1.0, %v340
    %v342 = vtanh.pop %v333
    %v343 = vmul.f32 %v341, 0.0
    %345 = vrot.lane.b32.xlu0 %v342, 64
    %v346 = vpop.permute.xlu0 %345
    %v348 = vmul.f32 %v341, %v346
    %350 = vrot.lane.b32.xlu0 %v348, 32
    %v351 = vpop.permute.xlu0 %350
    %v353 = vadd.f32 %v343, %v351
    %v354 = vtanh.pop %v353
    %356 = vrot.lane.b32.xlu0 %v354, 64
    %v357 = vpop.permute.xlu0 %356
    %v359 = vmul.f32 %v341, %v357
    %361 = vrot.lane.b32.xlu0 %v359, 32
    %v362 = vpop.permute.xlu0 %361
    %vm364 = vcmask 254976
    %365 = vst.msk [vmem:[#allocation2] sm:$0x3] %vm364, %v362
    %v366 = vsel %vm158, %v259, 0
    %368 = vmatprep.subr.mxu0 0.0
    %369 = vmatpush1.msra.mxu0 %v43
    %370 = vmatprep.subr.mxu0 0.0
    %371 = vmatpush1.msra.mxu0 %v44
    %372 = vmatprep.subr.mxu0 0.0
    %373 = vmatpush1.msra.mxu0 %v45
    %374 = vmatprep.subr.mxu0 0.0
    %375 = vmatpush1.msra.mxu0 %v46
    %376 = vmatprep.subr.mxu0 0.0
    %377 = vmatpush1.msra.mxu0 0.0
    %378 = vmatprep.subr.mxu0 0.0
    %379 = vmatpush1.msra.mxu0 0.0
    %380 = vmatprep.subr.mxu0 0.0
    %381 = vmatpush1.msra.mxu0 0.0
    %382 = vmatprep.subr.mxu0 0.0
    %383 = vmatpush1.msra.mxu0 0.0
    %384 = vmatprep.subr.mxu0 0.0
    %385 = vmatpush1.msra.mxu0 0.0
    %386 = vmatprep.subr.mxu0 0.0
    %387 = vmatpush1.msra.mxu0 0.0
    %388 = vmatprep.subr.mxu0 0.0
    %389 = vmatpush1.msra.mxu0 0.0
    %390 = vmatprep.subr.mxu0 0.0
    %391 = vmatpush1.msra.mxu0 0.0
    %392 = vmatprep.subr.mxu0 0.0
    %393 = vmatpush1.msra.mxu0 0.0
    %394 = vmatprep.subr.mxu0 0.0
    %395 = vmatpush1.msra.mxu0 0.0
    %396 = vmatprep.subr.mxu0 0.0
    %397 = vmatpush1.msra.mxu0 0.0
    %398 = vmatprep.subr.mxu0 0.0
    %399 = vmatpush1.msra.mxu0 0.0
    %400 = vmatprep.subr.mxu0 0.0
    %401 = vmatpush1.msra.mxu0 0.0
    %402 = vmatprep.subr.mxu0 0.0
    %403 = vmatpush1.msra.mxu0 0.0
    %404 = vmatprep.subr.mxu0 0.0
    %405 = vmatpush1.msra.mxu0 0.0
    %406 = vmatprep.subr.mxu0 0.0
    %407 = vmatpush1.msra.mxu0 0.0
    %408 = vmatprep.subr.mxu0 0.0
    %409 = vmatpush1.msra.mxu0 0.0
    %410 = vmatprep.subr.mxu0 0.0
    %411 = vmatpush1.msra.mxu0 0.0
    %412 = vmatprep.subr.mxu0 0.0
    %413 = vmatpush1.msra.mxu0 0.0
    %414 = vmatprep.subr.mxu0 0.0
    %415 = vmatpush1.msra.mxu0 0.0
    %416 = vmatprep.subr.mxu0 0.0
    %417 = vmatpush1.msra.mxu0 0.0
    %418 = vmatprep.subr.mxu0 0.0
    %419 = vmatpush1.msra.mxu0 0.0
    %420 = vmatprep.subr.mxu0 0.0
    %421 = vmatpush1.msra.mxu0 0.0
    %422 = vmatprep.subr.mxu0 0.0
    %423 = vmatpush1.msra.mxu0 0.0
    %424 = vmatprep.subr.mxu0 0.0
    %425 = vmatpush1.msra.mxu0 0.0
    %426 = vmatprep.subr.mxu0 0.0
    %427 = vmatpush1.msra.mxu0 0.0
    %428 = vmatprep.subr.mxu0 0.0
    %429 = vmatpush1.msra.mxu0 0.0
    %430 = vmatprep.subr.mxu0 0.0
    %431 = vmatpush1.msra.mxu0 0.0
    %432 = vmatprep.mubr.f32.mxu0 0.0
    %433 = vmatmul.mubr.f32.gmra.mrb[0].mxu0 %v366
    %v434 = vpop.f32.mrb[0].mxu0
    %v435 = vadd.f32 0.0, %v434
    %v436 = vpop.f32.mrb[0].mxu0
    %437 = vdwg.mxu0
    %v439 = vrot.slane %v435, 6
    %v441 = vadd.f32 %v150, %v439
    %v442 = vxor.u32 %v441, 2147483648
    %v443 = vmul.f32 %v442, 1.442695
    %v444 = vpow.pop %v443
    %v445 = vadd.f32 %v444, 1.0
    %v446 = vrcp.pop %v445
    %v447 = vmul.f32 1.0, %v446
    %v448 = vtanh.pop %v441
    %v450 = vrot.slane %v250, 6
    %v452 = vmul.f32 %v447, %v450
    %454 = vrot.lane.b32.xlu0 %v448, 64
    %v455 = vpop.permute.xlu0 %454
    %v457 = vmul.f32 %v447, %v455
    %459 = vrot.lane.b32.xlu0 %v457, 32
    %v460 = vpop.permute.xlu0 %459
    %v462 = vadd.f32 %v452, %v460
    %v463 = vtanh.pop %v462
    %465 = vrot.lane.b32.xlu0 %v463, 64
    %v466 = vpop.permute.xlu0 %465
    %v468 = vmul.f32 %v447, %v466
    %470 = vrot.lane.b32.xlu0 %v468, 32
    %v471 = vpop.permute.xlu0 %470
    %v473 = vrot.slane %v359, 6
    %474 = vrot.lane.b32.xlu0 %v473, 64
    %v475 = vpop.permute.xlu0 %474
    %v477 = vsel %vm158, %v471, %v475
    %v479 = vrot.slane %v477, 2
    %v480 = vsel %vm262, %v479, 0
    %482 = vmatprep.subr.mxu0 0.0
    %483 = vmatpush1.msra.mxu0 %v47
    %484 = vmatprep.subr.mxu0 0.0
    %485 = vmatpush1.msra.mxu0 %v48
    %486 = vmatprep.subr.mxu0 0.0
    %487 = vmatpush1.msra.mxu0 %v49
    %488 = vmatprep.subr.mxu0 0.0
    %489 = vmatpush1.msra.mxu0 %v50
    %490 = vmatprep.subr.mxu0 0.0
    %491 = vmatpush1.msra.mxu0 %v51
    %492 = vmatprep.subr.mxu0 0.0
    %493 = vmatpush1.msra.mxu0 %v52
    %494 = vmatprep.subr.mxu0 0.0
    %495 = vmatpush1.msra.mxu0 %v53
    %496 = vmatprep.subr.mxu0 0.0
    %497 = vmatpush1.msra.mxu0 %v54
    %498 = vmatprep.subr.mxu0 0.0
    %499 = vmatpush1.msra.mxu0 0.0
    %500 = vmatprep.subr.mxu0 0.0
    %501 = vmatpush1.msra.mxu0 0.0
    %502 = vmatprep.subr.mxu0 0.0
    %503 = vmatpush1.msra.mxu0 0.0
    %504 = vmatprep.subr.mxu0 0.0
    %505 = vmatpush1.msra.mxu0 0.0
    %506 = vmatprep.subr.mxu0 0.0
    %507 = vmatpush1.msra.mxu0 0.0
    %508 = vmatprep.subr.mxu0 0.0
    %509 = vmatpush1.msra.mxu0 0.0
    %510 = vmatprep.subr.mxu0 0.0
    %511 = vmatpush1.msra.mxu0 0.0
    %512 = vmatprep.subr.mxu0 0.0
    %513 = vmatpush1.msra.mxu0 0.0
    %514 = vmatprep.subr.mxu0 0.0
    %515 = vmatpush1.msra.mxu0 0.0
    %516 = vmatprep.subr.mxu0 0.0
    %517 = vmatpush1.msra.mxu0 0.0
    %518 = vmatprep.subr.mxu0 0.0
    %519 = vmatpush1.msra.mxu0 0.0
    %520 = vmatprep.subr.mxu0 0.0
    %521 = vmatpush1.msra.mxu0 0.0
    %522 = vmatprep.subr.mxu0 0.0
    %523 = vmatpush1.msra.mxu0 0.0
    %524 = vmatprep.subr.mxu0 0.0
    %525 = vmatpush1.msra.mxu0 0.0
    %526 = vmatprep.subr.mxu0 0.0
    %527 = vmatpush1.msra.mxu0 0.0
    %528 = vmatprep.subr.mxu0 0.0
    %529 = vmatpush1.msra.mxu0 0.0
    %530 = vmatprep.subr.mxu0 0.0
    %531 = vmatpush1.msra.mxu0 0.0
    %532 = vmatprep.subr.mxu0 0.0
    %533 = vmatpush1.msra.mxu0 0.0
    %534 = vmatprep.subr.mxu0 0.0
    %535 = vmatpush1.msra.mxu0 0.0
    %536 = vmatprep.subr.mxu0 0.0
    %537 = vmatpush1.msra.mxu0 0.0
    %538 = vmatprep.subr.mxu0 0.0
    %539 = vmatpush1.msra.mxu0 0.0
    %540 = vmatprep.subr.mxu0 0.0
    %541 = vmatpush1.msra.mxu0 0.0
    %542 = vmatprep.subr.mxu0 0.0
    %543 = vmatpush1.msra.mxu0 0.0
    %544 = vmatprep.subr.mxu0 0.0
    %545 = vmatpush1.msra.mxu0 0.0
    %546 = vmatprep.mubr.f32.mxu0 0.0
    %547 = vmatmul.mubr.f32.gmra.mrb[0].mxu0 %v480
    %v548 = vpop.f32.mrb[0].mxu0
    %v549 = vadd.f32 %v60, %v548
    %v550 = vpop.f32.mrb[0].mxu0
    %551 = vdwg.mxu0
    %v552 = vxor.u32 %v549, 2147483648
    %v553 = vmul.f32 %v552, 1.442695
    %v554 = vpow.pop %v553
    %v555 = vadd.f32 %v554, 1.0
    %v556 = vrcp.pop %v555
    %v557 = vmul.f32 1.0, %v556
    %v558 = vtanh.pop %v549
    %v559 = vmul.f32 %v557, %v353
    %561 = vrot.lane.b32.xlu0 %v558, 64
    %v562 = vpop.permute.xlu0 %561
    %v564 = vmul.f32 %v557, %v562
    %566 = vrot.lane.b32.xlu0 %v564, 32
    %v567 = vpop.permute.xlu0 %566
    %v569 = vadd.f32 %v559, %v567
    %v570 = vtanh.pop %v569
    %572 = vrot.lane.b32.xlu0 %v570, 64
    %v573 = vpop.permute.xlu0 %572
    %v575 = vmul.f32 %v557, %v573
    %577 = vrot.lane.b32.xlu0 %v575, 32
    %v578 = vpop.permute.xlu0 %577
    %580 = vst.msk [vmem:[#allocation2 + $0x2] sm:$0x3] %vm364, %v578
    %v581 = vrot.slane %v468, 2
    %582 = vrot.lane.b32.xlu0 %v581, 32
    %v583 = vpop.permute.xlu0 %582
    %v584 = vsel %vm158, %v583, 0
    %586 = vmatprep.subr.mxu0 0.0
    %587 = vmatpush1.msra.mxu0 %v43
    %588 = vmatprep.subr.mxu0 0.0
    %589 = vmatpush1.msra.mxu0 %v44
    %590 = vmatprep.subr.mxu0 0.0
    %591 = vmatpush1.msra.mxu0 %v45
    %592 = vmatprep.subr.mxu0 0.0
    %593 = vmatpush1.msra.mxu0 %v46
    %594 = vmatprep.subr.mxu0 0.0
    %595 = vmatpush1.msra.mxu0 0.0
    %596 = vmatprep.subr.mxu0 0.0
    %597 = vmatpush1.msra.mxu0 0.0
    %598 = vmatprep.subr.mxu0 0.0
    %599 = vmatpush1.msra.mxu0 0.0
    %600 = vmatprep.subr.mxu0 0.0
    %601 = vmatpush1.msra.mxu0 0.0
    %602 = vmatprep.subr.mxu0 0.0
    %603 = vmatpush1.msra.mxu0 0.0
    %604 = vmatprep.subr.mxu0 0.0
    %605 = vmatpush1.msra.mxu0 0.0
    %606 = vmatprep.subr.mxu0 0.0
    %607 = vmatpush1.msra.mxu0 0.0
    %608 = vmatprep.subr.mxu0 0.0
    %609 = vmatpush1.msra.mxu0 0.0
    %610 = vmatprep.subr.mxu0 0.0
    %611 = vmatpush1.msra.mxu0 0.0
    %612 = vmatprep.subr.mxu0 0.0
    %613 = vmatpush1.msra.mxu0 0.0
    %614 = vmatprep.subr.mxu0 0.0
    %615 = vmatpush1.msra.mxu0 0.0
    %616 = vmatprep.subr.mxu0 0.0
    %617 = vmatpush1.msra.mxu0 0.0
    %618 = vmatprep.subr.mxu0 0.0
    %619 = vmatpush1.msra.mxu0 0.0
    %620 = vmatprep.subr.mxu0 0.0
    %621 = vmatpush1.msra.mxu0 0.0
    %622 = vmatprep.subr.mxu0 0.0
    %623 = vmatpush1.msra.mxu0 0.0
    %624 = vmatprep.subr.mxu0 0.0
    %625 = vmatpush1.msra.mxu0 0.0
    %626 = vmatprep.subr.mxu0 0.0
    %627 = vmatpush1.msra.mxu0 0.0
    %628 = vmatprep.subr.mxu0 0.0
    %629 = vmatpush1.msra.mxu0 0.0
    %630 = vmatprep.subr.mxu0 0.0
    %631 = vmatpush1.msra.mxu0 0.0
    %632 = vmatprep.subr.mxu0 0.0
    %633 = vmatpush1.msra.mxu0 0.0
    %634 = vmatprep.subr.mxu0 0.0
    %635 = vmatpush1.msra.mxu0 0.0
    %636 = vmatprep.subr.mxu0 0.0
    %637 = vmatpush1.msra.mxu0 0.0
    %638 = vmatprep.subr.mxu0 0.0
    %639 = vmatpush1.msra.mxu0 0.0
    %640 = vmatprep.subr.mxu0 0.0
    %641 = vmatpush1.msra.mxu0 0.0
    %642 = vmatprep.subr.mxu0 0.0
    %643 = vmatpush1.msra.mxu0 0.0
    %644 = vmatprep.subr.mxu0 0.0
    %645 = vmatpush1.msra.mxu0 0.0
    %646 = vmatprep.subr.mxu0 0.0
    %647 = vmatpush1.msra.mxu0 0.0
    %648 = vmatprep.subr.mxu0 0.0
    %649 = vmatpush1.msra.mxu0 0.0
    %650 = vmatprep.mubr.f32.mxu0 0.0
    %651 = vmatmul.mubr.f32.gmra.mrb[0].mxu0 %v584
    %v652 = vpop.f32.mrb[0].mxu0
    %v653 = vadd.f32 0.0, %v652
    %v654 = vpop.f32.mrb[0].mxu0
    %655 = vdwg.mxu0
    %v657 = vrot.slane %v653, 4
    %v659 = vadd.f32 %v150, %v657
    %v660 = vxor.u32 %v659, 2147483648
    %v661 = vmul.f32 %v660, 1.442695
    %v662 = vpow.pop %v661
    %v663 = vadd.f32 %v662, 1.0
    %v664 = vrcp.pop %v663
    %v665 = vmul.f32 1.0, %v664
    %v666 = vtanh.pop %v659
    %v668 = vrot.slane %v462, 6
    %v670 = vmul.f32 %v665, %v668
    %672 = vrot.lane.b32.xlu0 %v666, 64
    %v673 = vpop.permute.xlu0 %672
    %v675 = vmul.f32 %v665, %v673
    %677 = vrot.lane.b32.xlu0 %v675, 32
    %v678 = vpop.permute.xlu0 %677
    %v680 = vadd.f32 %v670, %v678
    %v681 = vtanh.pop %v680
    %683 = vrot.lane.b32.xlu0 %v681, 64
    %v684 = vpop.permute.xlu0 %683
    %v686 = vmul.f32 %v665, %v684
    %688 = vrot.lane.b32.xlu0 %v686, 32
    %v689 = vpop.permute.xlu0 %688
    %v691 = vrot.slane %v575, 4
    %692 = vrot.lane.b32.xlu0 %v691, 64
    %v693 = vpop.permute.xlu0 %692
    %v695 = vsel %vm158, %v689, %v693
    %v697 = vrot.slane %v695, 4
    %v698 = vsel %vm262, %v697, 0
    %700 = vmatprep.subr.mxu0 0.0
    %701 = vmatpush1.msra.mxu0 %v47
    %702 = vmatprep.subr.mxu0 0.0
    %703 = vmatpush1.msra.mxu0 %v48
    %704 = vmatprep.subr.mxu0 0.0
    %705 = vmatpush1.msra.mxu0 %v49
    %706 = vmatprep.subr.mxu0 0.0
    %707 = vmatpush1.msra.mxu0 %v50
    %708 = vmatprep.subr.mxu0 0.0
    %709 = vmatpush1.msra.mxu0 %v51
    %710 = vmatprep.subr.mxu0 0.0
    %711 = vmatpush1.msra.mxu0 %v52
    %712 = vmatprep.subr.mxu0 0.0
    %713 = vmatpush1.msra.mxu0 %v53
    %714 = vmatprep.subr.mxu0 0.0
    %715 = vmatpush1.msra.mxu0 %v54
    %716 = vmatprep.subr.mxu0 0.0
    %717 = vmatpush1.msra.mxu0 0.0
    %718 = vmatprep.subr.mxu0 0.0
    %719 = vmatpush1.msra.mxu0 0.0
    %720 = vmatprep.subr.mxu0 0.0
    %721 = vmatpush1.msra.mxu0 0.0
    %722 = vmatprep.subr.mxu0 0.0
    %723 = vmatpush1.msra.mxu0 0.0
    %724 = vmatprep.subr.mxu0 0.0
    %725 = vmatpush1.msra.mxu0 0.0
    %726 = vmatprep.subr.mxu0 0.0
    %727 = vmatpush1.msra.mxu0 0.0
    %728 = vmatprep.subr.mxu0 0.0
    %729 = vmatpush1.msra.mxu0 0.0
    %730 = vmatprep.subr.mxu0 0.0
    %731 = vmatpush1.msra.mxu0 0.0
    %732 = vmatprep.subr.mxu0 0.0
    %733 = vmatpush1.msra.mxu0 0.0
    %734 = vmatprep.subr.mxu0 0.0
    %735 = vmatpush1.msra.mxu0 0.0
    %736 = vmatprep.subr.mxu0 0.0
    %737 = vmatpush1.msra.mxu0 0.0
    %738 = vmatprep.subr.mxu0 0.0
    %739 = vmatpush1.msra.mxu0 0.0
    %740 = vmatprep.subr.mxu0 0.0
    %741 = vmatpush1.msra.mxu0 0.0
    %742 = vmatprep.subr.mxu0 0.0
    %743 = vmatpush1.msra.mxu0 0.0
    %744 = vmatprep.subr.mxu0 0.0
    %745 = vmatpush1.msra.mxu0 0.0
    %746 = vmatprep.subr.mxu0 0.0
    %747 = vmatpush1.msra.mxu0 0.0
    %748 = vmatprep.subr.mxu0 0.0
    %749 = vmatpush1.msra.mxu0 0.0
    %750 = vmatprep.subr.mxu0 0.0
    %751 = vmatpush1.msra.mxu0 0.0
    %752 = vmatprep.subr.mxu0 0.0
    %753 = vmatpush1.msra.mxu0 0.0
    %754 = vmatprep.subr.mxu0 0.0
    %755 = vmatpush1.msra.mxu0 0.0
    %756 = vmatprep.subr.mxu0 0.0
    %757 = vmatpush1.msra.mxu0 0.0
    %758 = vmatprep.subr.mxu0 0.0
    %759 = vmatpush1.msra.mxu0 0.0
    %760 = vmatprep.subr.mxu0 0.0
    %761 = vmatpush1.msra.mxu0 0.0
    %762 = vmatprep.subr.mxu0 0.0
    %763 = vmatpush1.msra.mxu0 0.0
    %764 = vmatprep.mubr.f32.mxu0 0.0
    %765 = vmatmul.mubr.f32.gmra.mrb[0].mxu0 %v698
    %v766 = vpop.f32.mrb[0].mxu0
    %v767 = vadd.f32 %v60, %v766
    %v768 = vpop.f32.mrb[0].mxu0
    %769 = vdwg.mxu0
    %v770 = vxor.u32 %v767, 2147483648
    %v771 = vmul.f32 %v770, 1.442695
    %v772 = vpow.pop %v771
    %v773 = vadd.f32 %v772, 1.0
    %v774 = vrcp.pop %v773
    %v775 = vmul.f32 1.0, %v774
    %v776 = vtanh.pop %v767
    %v777 = vmul.f32 %v775, %v569
    %779 = vrot.lane.b32.xlu0 %v776, 64
    %v780 = vpop.permute.xlu0 %779
    %v782 = vmul.f32 %v775, %v780
    %784 = vrot.lane.b32.xlu0 %v782, 32
    %v785 = vpop.permute.xlu0 %784
    %v787 = vadd.f32 %v777, %v785
    %v788 = vtanh.pop %v787
    %790 = vrot.lane.b32.xlu0 %v788, 64
    %v791 = vpop.permute.xlu0 %790
    %v793 = vmul.f32 %v775, %v791
    %795 = vrot.lane.b32.xlu0 %v793, 32
    %v796 = vpop.permute.xlu0 %795
    %798 = vst.msk [vmem:[#allocation2 + $0x4] sm:$0x3] %vm364, %v796
    %v799 = vrot.slane %v686, 4
    %800 = vrot.lane.b32.xlu0 %v799, 32
    %v801 = vpop.permute.xlu0 %800
    %v802 = vsel %vm158, %v801, 0
    %804 = vmatprep.subr.mxu0 0.0
    %805 = vmatpush1.msra.mxu0 %v43
    %806 = vmatprep.subr.mxu0 0.0
    %807 = vmatpush1.msra.mxu0 %v44
    %808 = vmatprep.subr.mxu0 0.0
    %809 = vmatpush1.msra.mxu0 %v45
    %810 = vmatprep.subr.mxu0 0.0
    %811 = vmatpush1.msra.mxu0 %v46
    %812 = vmatprep.subr.mxu0 0.0
    %813 = vmatpush1.msra.mxu0 0.0
    %814 = vmatprep.subr.mxu0 0.0
    %815 = vmatpush1.msra.mxu0 0.0
    %816 = vmatprep.subr.mxu0 0.0
    %817 = vmatpush1.msra.mxu0 0.0
    %818 = vmatprep.subr.mxu0 0.0
    %819 = vmatpush1.msra.mxu0 0.0
    %820 = vmatprep.subr.mxu0 0.0
    %821 = vmatpush1.msra.mxu0 0.0
    %822 = vmatprep.subr.mxu0 0.0
    %823 = vmatpush1.msra.mxu0 0.0
    %824 = vmatprep.subr.mxu0 0.0
    %825 = vmatpush1.msra.mxu0 0.0
    %826 = vmatprep.subr.mxu0 0.0
    %827 = vmatpush1.msra.mxu0 0.0
    %828 = vmatprep.subr.mxu0 0.0
    %829 = vmatpush1.msra.mxu0 0.0
    %830 = vmatprep.subr.mxu0 0.0
    %831 = vmatpush1.msra.mxu0 0.0
    %832 = vmatprep.subr.mxu0 0.0
    %833 = vmatpush1.msra.mxu0 0.0
    %834 = vmatprep.subr.mxu0 0.0
    %835 = vmatpush1.msra.mxu0 0.0
    %836 = vmatprep.subr.mxu0 0.0
    %837 = vmatpush1.msra.mxu0 0.0
    %838 = vmatprep.subr.mxu0 0.0
    %839 = vmatpush1.msra.mxu0 0.0
    %840 = vmatprep.subr.mxu0 0.0
    %841 = vmatpush1.msra.mxu0 0.0
    %842 = vmatprep.subr.mxu0 0.0
    %843 = vmatpush1.msra.mxu0 0.0
    %844 = vmatprep.subr.mxu0 0.0
    %845 = vmatpush1.msra.mxu0 0.0
    %846 = vmatprep.subr.mxu0 0.0
    %847 = vmatpush1.msra.mxu0 0.0
    %848 = vmatprep.subr.mxu0 0.0
    %849 = vmatpush1.msra.mxu0 0.0
    %850 = vmatprep.subr.mxu0 0.0
    %851 = vmatpush1.msra.mxu0 0.0
    %852 = vmatprep.subr.mxu0 0.0
    %853 = vmatpush1.msra.mxu0 0.0
    %854 = vmatprep.subr.mxu0 0.0
    %855 = vmatpush1.msra.mxu0 0.0
    %856 = vmatprep.subr.mxu0 0.0
    %857 = vmatpush1.msra.mxu0 0.0
    %858 = vmatprep.subr.mxu0 0.0
    %859 = vmatpush1.msra.mxu0 0.0
    %860 = vmatprep.subr.mxu0 0.0
    %861 = vmatpush1.msra.mxu0 0.0
    %862 = vmatprep.subr.mxu0 0.0
    %863 = vmatpush1.msra.mxu0 0.0
    %864 = vmatprep.subr.mxu0 0.0
    %865 = vmatpush1.msra.mxu0 0.0
    %866 = vmatprep.subr.mxu0 0.0
    %867 = vmatpush1.msra.mxu0 0.0
    %868 = vmatprep.mubr.f32.mxu0 0.0
    %869 = vmatmul.mubr.f32.gmra.mrb[0].mxu0 %v802
    %v870 = vpop.f32.mrb[0].mxu0
    %v871 = vadd.f32 0.0, %v870
    %v872 = vpop.f32.mrb[0].mxu0
    %873 = vdwg.mxu0
    %v875 = vrot.slane %v871, 2
    %v877 = vadd.f32 %v150, %v875
    %v878 = vxor.u32 %v877, 2147483648
    %v879 = vmul.f32 %v878, 1.442695
    %v880 = vpow.pop %v879
    %v881 = vadd.f32 %v880, 1.0
    %v882 = vrcp.pop %v881
    %v883 = vmul.f32 1.0, %v882
    %v884 = vtanh.pop %v877
    %v886 = vrot.slane %v680, 6
    %v888 = vmul.f32 %v883, %v886
    %890 = vrot.lane.b32.xlu0 %v884, 64
    %v891 = vpop.permute.xlu0 %890
    %v893 = vmul.f32 %v883, %v891
    %895 = vrot.lane.b32.xlu0 %v893, 32
    %v896 = vpop.permute.xlu0 %895
    %v898 = vadd.f32 %v888, %v896
    %v899 = vtanh.pop %v898
    %901 = vrot.lane.b32.xlu0 %v899, 64
    %v902 = vpop.permute.xlu0 %901
    %v904 = vmul.f32 %v883, %v902
    %906 = vrot.lane.b32.xlu0 %v904, 32
    %v907 = vpop.permute.xlu0 %906
    %v909 = vrot.slane %v793, 2
    %910 = vrot.lane.b32.xlu0 %v909, 64
    %v911 = vpop.permute.xlu0 %910
    %v913 = vsel %vm158, %v907, %v911
    %v915 = vrot.slane %v913, 6
    %v916 = vsel %vm262, %v915, 0
    %918 = vmatprep.subr.mxu0 0.0
    %919 = vmatpush1.msra.mxu0 %v47
    %920 = vmatprep.subr.mxu0 0.0
    %921 = vmatpush1.msra.mxu0 %v48
    %922 = vmatprep.subr.mxu0 0.0
    %923 = vmatpush1.msra.mxu0 %v49
    %924 = vmatprep.subr.mxu0 0.0
    %925 = vmatpush1.msra.mxu0 %v50
    %926 = vmatprep.subr.mxu0 0.0
    %927 = vmatpush1.msra.mxu0 %v51
    %928 = vmatprep.subr.mxu0 0.0
    %929 = vmatpush1.msra.mxu0 %v52
    %930 = vmatprep.subr.mxu0 0.0
    %931 = vmatpush1.msra.mxu0 %v53
    %932 = vmatprep.subr.mxu0 0.0
    %933 = vmatpush1.msra.mxu0 %v54
    %934 = vmatprep.subr.mxu0 0.0
    %935 = vmatpush1.msra.mxu0 0.0
    %936 = vmatprep.subr.mxu0 0.0
    %937 = vmatpush1.msra.mxu0 0.0
    %938 = vmatprep.subr.mxu0 0.0
    %939 = vmatpush1.msra.mxu0 0.0
    %940 = vmatprep.subr.mxu0 0.0
    %941 = vmatpush1.msra.mxu0 0.0
    %942 = vmatprep.subr.mxu0 0.0
    %943 = vmatpush1.msra.mxu0 0.0
    %944 = vmatprep.subr.mxu0 0.0
    %945 = vmatpush1.msra.mxu0 0.0
    %946 = vmatprep.subr.mxu0 0.0
    %947 = vmatpush1.msra.mxu0 0.0
    %948 = vmatprep.subr.mxu0 0.0
    %949 = vmatpush1.msra.mxu0 0.0
    %950 = vmatprep.subr.mxu0 0.0
    %951 = vmatpush1.msra.mxu0 0.0
    %952 = vmatprep.subr.mxu0 0.0
    %953 = vmatpush1.msra.mxu0 0.0
    %954 = vmatprep.subr.mxu0 0.0
    %955 = vmatpush1.msra.mxu0 0.0
    %956 = vmatprep.subr.mxu0 0.0
    %957 = vmatpush1.msra.mxu0 0.0
    %958 = vmatprep.subr.mxu0 0.0
    %959 = vmatpush1.msra.mxu0 0.0
    %960 = vmatprep.subr.mxu0 0.0
    %961 = vmatpush1.msra.mxu0 0.0
    %962 = vmatprep.subr.mxu0 0.0
    %963 = vmatpush1.msra.mxu0 0.0
    %964 = vmatprep.subr.mxu0 0.0
    %965 = vmatpush1.msra.mxu0 0.0
    %966 = vmatprep.subr.mxu0 0.0
    %967 = vmatpush1.msra.mxu0 0.0
    %968 = vmatprep.subr.mxu0 0.0
    %969 = vmatpush1.msra.mxu0 0.0
    %970 = vmatprep.subr.mxu0 0.0
    %971 = vmatpush1.msra.mxu0 0.0
    %972 = vmatprep.subr.mxu0 0.0
    %973 = vmatpush1.msra.mxu0 0.0
    %974 = vmatprep.subr.mxu0 0.0
    %975 = vmatpush1.msra.mxu0 0.0
    %976 = vmatprep.subr.mxu0 0.0
    %977 = vmatpush1.msra.mxu0 0.0
    %978 = vmatprep.subr.mxu0 0.0
    %979 = vmatpush1.msra.mxu0 0.0
    %980 = vmatprep.subr.mxu0 0.0
    %981 = vmatpush1.msra.mxu0 0.0
    %982 = vmatprep.mubr.f32.mxu0 0.0
    %983 = vmatmul.mubr.f32.gmra.mrb[0].mxu0 %v916
    %v984 = vpop.f32.mrb[0].mxu0
    %v985 = vadd.f32 %v60, %v984
    %v986 = vpop.f32.mrb[0].mxu0
    %987 = vdwg.mxu0
    %v988 = vxor.u32 %v985, 2147483648
    %v989 = vmul.f32 %v988, 1.442695
    %v990 = vpow.pop %v989
    %v991 = vadd.f32 %v990, 1.0
    %v992 = vrcp.pop %v991
    %v993 = vmul.f32 1.0, %v992
    %v994 = vtanh.pop %v985
    %v995 = vmul.f32 %v993, %v787
    %997 = vrot.lane.b32.xlu0 %v994, 64
    %v998 = vpop.permute.xlu0 %997
    %v1000 = vmul.f32 %v993, %v998
    %1002 = vrot.lane.b32.xlu0 %v1000, 32
    %v1003 = vpop.permute.xlu0 %1002
    %v1005 = vadd.f32 %v995, %v1003
    %v1006 = vtanh.pop %v1005
    %1008 = vrot.lane.b32.xlu0 %v1006, 64
    %v1009 = vpop.permute.xlu0 %1008
    %v1011 = vmul.f32 %v993, %v1009
    %1013 = vrot.lane.b32.xlu0 %v1011, 32
    %v1014 = vpop.permute.xlu0 %1013
    %1016 = vst.msk [vmem:[#allocation2 + $0x6] sm:$0x3] %vm364, %v1014
    %v1017 = vrot.slane %v904, 6
    %1018 = vrot.lane.b32.xlu0 %v1017, 32
    %v1019 = vpop.permute.xlu0 %1018
    %v1020 = vsel %vm158, %v1019, 0
    %1022 = vmatprep.subr.mxu0 0.0
    %1023 = vmatpush1.msra.mxu0 %v43
    %1024 = vmatprep.subr.mxu0 0.0
    %1025 = vmatpush1.msra.mxu0 %v44
    %1026 = vmatprep.subr.mxu0 0.0
    %1027 = vmatpush1.msra.mxu0 %v45
    %1028 = vmatprep.subr.mxu0 0.0
    %1029 = vmatpush1.msra.mxu0 %v46
    %1030 = vmatprep.subr.mxu0 0.0
    %1031 = vmatpush1.msra.mxu0 0.0
    %1032 = vmatprep.subr.mxu0 0.0
    %1033 = vmatpush1.msra.mxu0 0.0
    %1034 = vmatprep.subr.mxu0 0.0
    %1035 = vmatpush1.msra.mxu0 0.0
    %1036 = vmatprep.subr.mxu0 0.0
    %1037 = vmatpush1.msra.mxu0 0.0
    %1038 = vmatprep.subr.mxu0 0.0
    %1039 = vmatpush1.msra.mxu0 0.0
    %1040 = vmatprep.subr.mxu0 0.0
    %1041 = vmatpush1.msra.mxu0 0.0
    %1042 = vmatprep.subr.mxu0 0.0
    %1043 = vmatpush1.msra.mxu0 0.0
    %1044 = vmatprep.subr.mxu0 0.0
    %1045 = vmatpush1.msra.mxu0 0.0
    %1046 = vmatprep.subr.mxu0 0.0
    %1047 = vmatpush1.msra.mxu0 0.0
    %1048 = vmatprep.subr.mxu0 0.0
    %1049 = vmatpush1.msra.mxu0 0.0
    %1050 = vmatprep.subr.mxu0 0.0
    %1051 = vmatpush1.msra.mxu0 0.0
    %1052 = vmatprep.subr.mxu0 0.0
    %1053 = vmatpush1.msra.mxu0 0.0
    %1054 = vmatprep.subr.mxu0 0.0
    %1055 = vmatpush1.msra.mxu0 0.0
    %1056 = vmatprep.subr.mxu0 0.0
    %1057 = vmatpush1.msra.mxu0 0.0
    %1058 = vmatprep.subr.mxu0 0.0
    %1059 = vmatpush1.msra.mxu0 0.0
    %1060 = vmatprep.subr.mxu0 0.0
    %1061 = vmatpush1.msra.mxu0 0.0
    %1062 = vmatprep.subr.mxu0 0.0
    %1063 = vmatpush1.msra.mxu0 0.0
    %1064 = vmatprep.subr.mxu0 0.0
    %1065 = vmatpush1.msra.mxu0 0.0
    %1066 = vmatprep.subr.mxu0 0.0
    %1067 = vmatpush1.msra.mxu0 0.0
    %1068 = vmatprep.subr.mxu0 0.0
    %1069 = vmatpush1.msra.mxu0 0.0
    %1070 = vmatprep.subr.mxu0 0.0
    %1071 = vmatpush1.msra.mxu0 0.0
    %1072 = vmatprep.subr.mxu0 0.0
    %1073 = vmatpush1.msra.mxu0 0.0
    %1074 = vmatprep.subr.mxu0 0.0
    %1075 = vmatpush1.msra.mxu0 0.0
    %1076 = vmatprep.subr.mxu0 0.0
    %1077 = vmatpush1.msra.mxu0 0.0
    %1078 = vmatprep.subr.mxu0 0.0
    %1079 = vmatpush1.msra.mxu0 0.0
    %1080 = vmatprep.subr.mxu0 0.0
    %1081 = vmatpush1.msra.mxu0 0.0
    %1082 = vmatprep.subr.mxu0 0.0
    %1083 = vmatpush1.msra.mxu0 0.0
    %1084 = vmatprep.subr.mxu0 0.0
    %1085 = vmatpush1.msra.mxu0 0.0
    %1086 = vmatprep.mubr.f32.mxu0 0.0
    %1087 = vmatmul.mubr.f32.gmra.mrb[0].mxu0 %v1020
    %v1088 = vpop.f32.mrb[0].mxu0
    %v1089 = vadd.f32 0.0, %v1088
    %v1090 = vpop.f32.mrb[0].mxu0
    %1091 = vdwg.mxu0
    %v1092 = vadd.f32 %v155, %v1089
    %v1093 = vxor.u32 %v1092, 2147483648
    %v1094 = vmul.f32 %v1093, 1.442695
    %v1095 = vpow.pop %v1094
    %v1096 = vadd.f32 %v1095, 1.0
    %v1097 = vrcp.pop %v1096
    %v1098 = vmul.f32 1.0, %v1097
    %v1099 = vtanh.pop %v1092
    %v1101 = vrot.slane %v898, 6
    %v1103 = vmul.f32 %v1098, %v1101
    %1105 = vrot.lane.b32.xlu0 %v1099, 64
    %v1106 = vpop.permute.xlu0 %1105
    %v1108 = vmul.f32 %v1098, %v1106
    %1110 = vrot.lane.b32.xlu0 %v1108, 32
    %v1111 = vpop.permute.xlu0 %1110
    %v1113 = vadd.f32 %v1103, %v1111
    %v1114 = vtanh.pop %v1113
    %1116 = vrot.lane.b32.xlu0 %v1114, 64
    %v1117 = vpop.permute.xlu0 %1116
    %v1119 = vmul.f32 %v1098, %v1117
    %1121 = vrot.lane.b32.xlu0 %v1119, 32
    %v1122 = vpop.permute.xlu0 %1121
    %1124 = vrot.lane.b32.xlu0 %v1011, 64
    %v1125 = vpop.permute.xlu0 %1124
    %v1127 = vsel %vm158, %v1122, %v1125
    %v1129 = vsel %vm262, %v1127, 0
    %1131 = vmatprep.subr.mxu0 0.0
    %1132 = vmatpush1.msra.mxu0 %v47
    %1133 = vmatprep.subr.mxu0 0.0
    %1134 = vmatpush1.msra.mxu0 %v48
    %1135 = vmatprep.subr.mxu0 0.0
    %1136 = vmatpush1.msra.mxu0 %v49
    %1137 = vmatprep.subr.mxu0 0.0
    %1138 = vmatpush1.msra.mxu0 %v50
    %1139 = vmatprep.subr.mxu0 0.0
    %1140 = vmatpush1.msra.mxu0 %v51
    %1141 = vmatprep.subr.mxu0 0.0
    %1142 = vmatpush1.msra.mxu0 %v52
    %1143 = vmatprep.subr.mxu0 0.0
    %1144 = vmatpush1.msra.mxu0 %v53
    %1145 = vmatprep.subr.mxu0 0.0
    %1146 = vmatpush1.msra.mxu0 %v54
    %1147 = vmatprep.subr.mxu0 0.0
    %1148 = vmatpush1.msra.mxu0 0.0
    %1149 = vmatprep.subr.mxu0 0.0
    %1150 = vmatpush1.msra.mxu0 0.0
    %1151 = vmatprep.subr.mxu0 0.0
    %1152 = vmatpush1.msra.mxu0 0.0
    %1153 = vmatprep.subr.mxu0 0.0
    %1154 = vmatpush1.msra.mxu0 0.0
    %1155 = vmatprep.subr.mxu0 0.0
    %1156 = vmatpush1.msra.mxu0 0.0
    %1157 = vmatprep.subr.mxu0 0.0
    %1158 = vmatpush1.msra.mxu0 0.0
    %1159 = vmatprep.subr.mxu0 0.0
    %1160 = vmatpush1.msra.mxu0 0.0
    %1161 = vmatprep.subr.mxu0 0.0
    %1162 = vmatpush1.msra.mxu0 0.0
    %1163 = vmatprep.subr.mxu0 0.0
    %1164 = vmatpush1.msra.mxu0 0.0
    %1165 = vmatprep.subr.mxu0 0.0
    %1166 = vmatpush1.msra.mxu0 0.0
    %1167 = vmatprep.subr.mxu0 0.0
    %1168 = vmatpush1.msra.mxu0 0.0
    %1169 = vmatprep.subr.mxu0 0.0
    %1170 = vmatpush1.msra.mxu0 0.0
    %1171 = vmatprep.subr.mxu0 0.0
    %1172 = vmatpush1.msra.mxu0 0.0
    %1173 = vmatprep.subr.mxu0 0.0
    %1174 = vmatpush1.msra.mxu0 0.0
    %1175 = vmatprep.subr.mxu0 0.0
    %1176 = vmatpush1.msra.mxu0 0.0
    %1177 = vmatprep.subr.mxu0 0.0
    %1178 = vmatpush1.msra.mxu0 0.0
    %1179 = vmatprep.subr.mxu0 0.0
    %1180 = vmatpush1.msra.mxu0 0.0
    %1181 = vmatprep.subr.mxu0 0.0
    %1182 = vmatpush1.msra.mxu0 0.0
    %1183 = vmatprep.subr.mxu0 0.0
    %1184 = vmatpush1.msra.mxu0 0.0
    %1185 = vmatprep.subr.mxu0 0.0
    %1186 = vmatpush1.msra.mxu0 0.0
    %1187 = vmatprep.subr.mxu0 0.0
    %1188 = vmatpush1.msra.mxu0 0.0
    %1189 = vmatprep.subr.mxu0 0.0
    %1190 = vmatpush1.msra.mxu0 0.0
    %1191 = vmatprep.subr.mxu0 0.0
    %1192 = vmatpush1.msra.mxu0 0.0
    %1193 = vmatprep.subr.mxu0 0.0
    %1194 = vmatpush1.msra.mxu0 0.0
    %1195 = vmatprep.mubr.f32.mxu0 0.0
    %1196 = vmatmul.mubr.f32.gmra.mrb[0].mxu0 %v1129
    %v1197 = vpop.f32.mrb[0].mxu0
    %v1198 = vadd.f32 %v60, %v1197
    %v1199 = vpop.f32.mrb[0].mxu0
    %1200 = vdwg.mxu0
    %v1201 = vxor.u32 %v1198, 2147483648
    %v1202 = vmul.f32 %v1201, 1.442695
    %v1203 = vpow.pop %v1202
    %v1204 = vadd.f32 %v1203, 1.0
    %v1205 = vrcp.pop %v1204
    %v1206 = vmul.f32 1.0, %v1205
    %v1207 = vtanh.pop %v1198
    %v1208 = vmul.f32 %v1206, %v1005
    %1210 = vrot.lane.b32.xlu0 %v1207, 64
    %v1211 = vpop.permute.xlu0 %1210
    %v1213 = vmul.f32 %v1206, %v1211
    %1215 = vrot.lane.b32.xlu0 %v1213, 32
    %v1216 = vpop.permute.xlu0 %1215
    %v1218 = vadd.f32 %v1208, %v1216
    %v1219 = vtanh.pop %v1218
    %1221 = vrot.lane.b32.xlu0 %v1219, 64
    %v1222 = vpop.permute.xlu0 %1221
    %v1224 = vmul.f32 %v1206, %v1222
    %1226 = vrot.lane.b32.xlu0 %v1224, 32
    %v1227 = vpop.permute.xlu0 %1226
    %1229 = vst.msk [vmem:[#allocation2 + $0x8] sm:$0x3] %vm364, %v1227
    %v1230 = vsel %vm158, %v1122, 0
    %1232 = vmatprep.subr.mxu0 0.0
    %1233 = vmatpush1.msra.mxu0 %v43
    %1234 = vmatprep.subr.mxu0 0.0
    %1235 = vmatpush1.msra.mxu0 %v44
    %1236 = vmatprep.subr.mxu0 0.0
    %1237 = vmatpush1.msra.mxu0 %v45
    %1238 = vmatprep.subr.mxu0 0.0
    %1239 = vmatpush1.msra.mxu0 %v46
    %1240 = vmatprep.subr.mxu0 0.0
    %1241 = vmatpush1.msra.mxu0 0.0
    %1242 = vmatprep.subr.mxu0 0.0
    %1243 = vmatpush1.msra.mxu0 0.0
    %1244 = vmatprep.subr.mxu0 0.0
    %1245 = vmatpush1.msra.mxu0 0.0
    %1246 = vmatprep.subr.mxu0 0.0
    %1247 = vmatpush1.msra.mxu0 0.0
    %1248 = vmatprep.subr.mxu0 0.0
    %1249 = vmatpush1.msra.mxu0 0.0
    %1250 = vmatprep.subr.mxu0 0.0
    %1251 = vmatpush1.msra.mxu0 0.0
    %1252 = vmatprep.subr.mxu0 0.0
    %1253 = vmatpush1.msra.mxu0 0.0
    %1254 = vmatprep.subr.mxu0 0.0
    %1255 = vmatpush1.msra.mxu0 0.0
    %1256 = vmatprep.subr.mxu0 0.0
    %1257 = vmatpush1.msra.mxu0 0.0
    %1258 = vmatprep.subr.mxu0 0.0
    %1259 = vmatpush1.msra.mxu0 0.0
    %1260 = vmatprep.subr.mxu0 0.0
    %1261 = vmatpush1.msra.mxu0 0.0
    %1262 = vmatprep.subr.mxu0 0.0
    %1263 = vmatpush1.msra.mxu0 0.0
    %1264 = vmatprep.subr.mxu0 0.0
    %1265 = vmatpush1.msra.mxu0 0.0
    %1266 = vmatprep.subr.mxu0 0.0
    %1267 = vmatpush1.msra.mxu0 0.0
    %1268 = vmatprep.subr.mxu0 0.0
    %1269 = vmatpush1.msra.mxu0 0.0
    %1270 = vmatprep.subr.mxu0 0.0
    %1271 = vmatpush1.msra.mxu0 0.0
    %1272 = vmatprep.subr.mxu0 0.0
    %1273 = vmatpush1.msra.mxu0 0.0
    %1274 = vmatprep.subr.mxu0 0.0
    %1275 = vmatpush1.msra.mxu0 0.0
    %1276 = vmatprep.subr.mxu0 0.0
    %1277 = vmatpush1.msra.mxu0 0.0
    %1278 = vmatprep.subr.mxu0 0.0
    %1279 = vmatpush1.msra.mxu0 0.0
    %1280 = vmatprep.subr.mxu0 0.0
    %1281 = vmatpush1.msra.mxu0 0.0
    %1282 = vmatprep.subr.mxu0 0.0
    %1283 = vmatpush1.msra.mxu0 0.0
    %1284 = vmatprep.subr.mxu0 0.0
    %1285 = vmatpush1.msra.mxu0 0.0
    %1286 = vmatprep.subr.mxu0 0.0
    %1287 = vmatpush1.msra.mxu0 0.0
    %1288 = vmatprep.subr.mxu0 0.0
    %1289 = vmatpush1.msra.mxu0 0.0
    %1290 = vmatprep.subr.mxu0 0.0
    %1291 = vmatpush1.msra.mxu0 0.0
    %1292 = vmatprep.subr.mxu0 0.0
    %1293 = vmatpush1.msra.mxu0 0.0
    %1294 = vmatprep.subr.mxu0 0.0
    %1295 = vmatpush1.msra.mxu0 0.0
    %1296 = vmatprep.mubr.f32.mxu0 0.0
    %1297 = vmatmul.mubr.f32.gmra.mrb[0].mxu0 %v1230
    %v1298 = vpop.f32.mrb[0].mxu0
    %v1299 = vadd.f32 0.0, %v1298
    %v1300 = vpop.f32.mrb[0].mxu0
    %1301 = vdwg.mxu0
    %v1303 = vrot.slane %v1299, 6
    %v1305 = vadd.f32 %v155, %v1303
    %v1306 = vxor.u32 %v1305, 2147483648
    %v1307 = vmul.f32 %v1306, 1.442695
    %v1308 = vpow.pop %v1307
    %v1309 = vadd.f32 %v1308, 1.0
    %v1310 = vrcp.pop %v1309
    %v1311 = vmul.f32 1.0, %v1310
    %v1312 = vtanh.pop %v1305
    %v1314 = vrot.slane %v1113, 6
    %v1316 = vmul.f32 %v1311, %v1314
    %1318 = vrot.lane.b32.xlu0 %v1312, 64
    %v1319 = vpop.permute.xlu0 %1318
    %v1321 = vmul.f32 %v1311, %v1319
    %1323 = vrot.lane.b32.xlu0 %v1321, 32
    %v1324 = vpop.permute.xlu0 %1323
    %v1326 = vadd.f32 %v1316, %v1324
    %v1327 = vtanh.pop %v1326
    %1329 = vrot.lane.b32.xlu0 %v1327, 64
    %v1330 = vpop.permute.xlu0 %1329
    %v1332 = vmul.f32 %v1311, %v1330
    %1334 = vrot.lane.b32.xlu0 %v1332, 32
    %v1335 = vpop.permute.xlu0 %1334
    %v1337 = vrot.slane %v1224, 6
    %1338 = vrot.lane.b32.xlu0 %v1337, 64
    %v1339 = vpop.permute.xlu0 %1338
    %v1341 = vsel %vm158, %v1335, %v1339
    %v1343 = vrot.slane %v1341, 2
    %v1344 = vsel %vm262, %v1343, 0
    %1346 = vmatprep.subr.mxu0 0.0
    %1347 = vmatpush1.msra.mxu0 %v47
    %1348 = vmatprep.subr.mxu0 0.0
    %1349 = vmatpush1.msra.mxu0 %v48
    %1350 = vmatprep.subr.mxu0 0.0
    %1351 = vmatpush1.msra.mxu0 %v49
    %1352 = vmatprep.subr.mxu0 0.0
    %1353 = vmatpush1.msra.mxu0 %v50
    %1354 = vmatprep.subr.mxu0 0.0
    %1355 = vmatpush1.msra.mxu0 %v51
    %1356 = vmatprep.subr.mxu0 0.0
    %1357 = vmatpush1.msra.mxu0 %v52
    %1358 = vmatprep.subr.mxu0 0.0
    %1359 = vmatpush1.msra.mxu0 %v53
    %1360 = vmatprep.subr.mxu0 0.0
    %1361 = vmatpush1.msra.mxu0 %v54
    %1362 = vmatprep.subr.mxu0 0.0
    %1363 = vmatpush1.msra.mxu0 0.0
    %1364 = vmatprep.subr.mxu0 0.0
    %1365 = vmatpush1.msra.mxu0 0.0
    %1366 = vmatprep.subr.mxu0 0.0
    %1367 = vmatpush1.msra.mxu0 0.0
    %1368 = vmatprep.subr.mxu0 0.0
    %1369 = vmatpush1.msra.mxu0 0.0
    %1370 = vmatprep.subr.mxu0 0.0
    %1371 = vmatpush1.msra.mxu0 0.0
    %1372 = vmatprep.subr.mxu0 0.0
    %1373 = vmatpush1.msra.mxu0 0.0
    %1374 = vmatprep.subr.mxu0 0.0
    %1375 = vmatpush1.msra.mxu0 0.0
    %1376 = vmatprep.subr.mxu0 0.0
    %1377 = vmatpush1.msra.mxu0 0.0
    %1378 = vmatprep.subr.mxu0 0.0
    %1379 = vmatpush1.msra.mxu0 0.0
    %1380 = vmatprep.subr.mxu0 0.0
    %1381 = vmatpush1.msra.mxu0 0.0
    %1382 = vmatprep.subr.mxu0 0.0
    %1383 = vmatpush1.msra.mxu0 0.0
    %1384 = vmatprep.subr.mxu0 0.0
    %1385 = vmatpush1.msra.mxu0 0.0
    %1386 = vmatprep.subr.mxu0 0.0
    %1387 = vmatpush1.msra.mxu0 0.0
    %1388 = vmatprep.subr.mxu0 0.0
    %1389 = vmatpush1.msra.mxu0 0.0
    %1390 = vmatprep.subr.mxu0 0.0
    %1391 = vmatpush1.msra.mxu0 0.0
    %1392 = vmatprep.subr.mxu0 0.0
    %1393 = vmatpush1.msra.mxu0 0.0
    %1394 = vmatprep.subr.mxu0 0.0
    %1395 = vmatpush1.msra.mxu0 0.0
    %1396 = vmatprep.subr.mxu0 0.0
    %1397 = vmatpush1.msra.mxu0 0.0
    %1398 = vmatprep.subr.mxu0 0.0
    %1399 = vmatpush1.msra.mxu0 0.0
    %1400 = vmatprep.subr.mxu0 0.0
    %1401 = vmatpush1.msra.mxu0 0.0
    %1402 = vmatprep.subr.mxu0 0.0
    %1403 = vmatpush1.msra.mxu0 0.0
    %1404 = vmatprep.subr.mxu0 0.0
    %1405 = vmatpush1.msra.mxu0 0.0
    %1406 = vmatprep.subr.mxu0 0.0
    %1407 = vmatpush1.msra.mxu0 0.0
    %1408 = vmatprep.subr.mxu0 0.0
    %1409 = vmatpush1.msra.mxu0 0.0
    %1410 = vmatprep.mubr.f32.mxu0 0.0
    %1411 = vmatmul.mubr.f32.gmra.mrb[0].mxu0 %v1344
    %v1412 = vpop.f32.mrb[0].mxu0
    %v1413 = vadd.f32 %v60, %v1412
    %v1414 = vpop.f32.mrb[0].mxu0
    %1415 = vdwg.mxu0
    %v1416 = vxor.u32 %v1413, 2147483648
    %v1417 = vmul.f32 %v1416, 1.442695
    %v1418 = vpow.pop %v1417
    %v1419 = vadd.f32 %v1418, 1.0
    %v1420 = vrcp.pop %v1419
    %v1421 = vmul.f32 1.0, %v1420
    %v1422 = vtanh.pop %v1413
    %v1423 = vmul.f32 %v1421, %v1218
    %1425 = vrot.lane.b32.xlu0 %v1422, 64
    %v1426 = vpop.permute.xlu0 %1425
    %v1428 = vmul.f32 %v1421, %v1426
    %1430 = vrot.lane.b32.xlu0 %v1428, 32
    %v1431 = vpop.permute.xlu0 %1430
    %v1433 = vadd.f32 %v1423, %v1431
    %v1434 = vtanh.pop %v1433
    %1436 = vrot.lane.b32.xlu0 %v1434, 64
    %v1437 = vpop.permute.xlu0 %1436
    %v1439 = vmul.f32 %v1421, %v1437
    %1441 = vrot.lane.b32.xlu0 %v1439, 32
    %v1442 = vpop.permute.xlu0 %1441
    %1444 = vst.msk [vmem:[#allocation2 + $0xa] sm:$0x3] %vm364, %v1442
    %v1445 = vrot.slane %v1332, 2
    %1446 = vrot.lane.b32.xlu0 %v1445, 32
    %v1447 = vpop.permute.xlu0 %1446
    %v1448 = vsel %vm158, %v1447, 0
    %1450 = vmatprep.subr.mxu0 0.0
    %1451 = vmatpush1.msra.mxu0 %v43
    %1452 = vmatprep.subr.mxu0 0.0
    %1453 = vmatpush1.msra.mxu0 %v44
    %1454 = vmatprep.subr.mxu0 0.0
    %1455 = vmatpush1.msra.mxu0 %v45
    %1456 = vmatprep.subr.mxu0 0.0
    %1457 = vmatpush1.msra.mxu0 %v46
    %1458 = vmatprep.subr.mxu0 0.0
    %1459 = vmatpush1.msra.mxu0 0.0
    %1460 = vmatprep.subr.mxu0 0.0
    %1461 = vmatpush1.msra.mxu0 0.0
    %1462 = vmatprep.subr.mxu0 0.0
    %1463 = vmatpush1.msra.mxu0 0.0
    %1464 = vmatprep.subr.mxu0 0.0
    %1465 = vmatpush1.msra.mxu0 0.0
    %1466 = vmatprep.subr.mxu0 0.0
    %1467 = vmatpush1.msra.mxu0 0.0
    %1468 = vmatprep.subr.mxu0 0.0
    %1469 = vmatpush1.msra.mxu0 0.0
    %1470 = vmatprep.subr.mxu0 0.0
    %1471 = vmatpush1.msra.mxu0 0.0
    %1472 = vmatprep.subr.mxu0 0.0
    %1473 = vmatpush1.msra.mxu0 0.0
    %1474 = vmatprep.subr.mxu0 0.0
    %1475 = vmatpush1.msra.mxu0 0.0
    %1476 = vmatprep.subr.mxu0 0.0
    %1477 = vmatpush1.msra.mxu0 0.0
    %1478 = vmatprep.subr.mxu0 0.0
    %1479 = vmatpush1.msra.mxu0 0.0
    %1480 = vmatprep.subr.mxu0 0.0
    %1481 = vmatpush1.msra.mxu0 0.0
    %1482 = vmatprep.subr.mxu0 0.0
    %1483 = vmatpush1.msra.mxu0 0.0
    %1484 = vmatprep.subr.mxu0 0.0
    %1485 = vmatpush1.msra.mxu0 0.0
    %1486 = vmatprep.subr.mxu0 0.0
    %1487 = vmatpush1.msra.mxu0 0.0
    %1488 = vmatprep.subr.mxu0 0.0
    %1489 = vmatpush1.msra.mxu0 0.0
    %1490 = vmatprep.subr.mxu0 0.0
    %1491 = vmatpush1.msra.mxu0 0.0
    %1492 = vmatprep.subr.mxu0 0.0
    %1493 = vmatpush1.msra.mxu0 0.0
    %1494 = vmatprep.subr.mxu0 0.0
    %1495 = vmatpush1.msra.mxu0 0.0
    %1496 = vmatprep.subr.mxu0 0.0
    %1497 = vmatpush1.msra.mxu0 0.0
    %1498 = vmatprep.subr.mxu0 0.0
    %1499 = vmatpush1.msra.mxu0 0.0
    %1500 = vmatprep.subr.mxu0 0.0
    %1501 = vmatpush1.msra.mxu0 0.0
    %1502 = vmatprep.subr.mxu0 0.0
    %1503 = vmatpush1.msra.mxu0 0.0
    %1504 = vmatprep.subr.mxu0 0.0
    %1505 = vmatpush1.msra.mxu0 0.0
    %1506 = vmatprep.subr.mxu0 0.0
    %1507 = vmatpush1.msra.mxu0 0.0
    %1508 = vmatprep.subr.mxu0 0.0
    %1509 = vmatpush1.msra.mxu0 0.0
    %1510 = vmatprep.subr.mxu0 0.0
    %1511 = vmatpush1.msra.mxu0 0.0
    %1512 = vmatprep.subr.mxu0 0.0
    %1513 = vmatpush1.msra.mxu0 0.0
    %1514 = vmatprep.mubr.f32.mxu0 0.0
    %1515 = vmatmul.mubr.f32.gmra.mrb[0].mxu0 %v1448
    %v1516 = vpop.f32.mrb[0].mxu0
    %v1517 = vadd.f32 0.0, %v1516
    %v1518 = vpop.f32.mrb[0].mxu0
    %1519 = vdwg.mxu0
    %v1521 = vrot.slane %v1517, 4
    %v1523 = vadd.f32 %v155, %v1521
    %v1524 = vxor.u32 %v1523, 2147483648
    %v1525 = vmul.f32 %v1524, 1.442695
    %v1526 = vpow.pop %v1525
    %v1527 = vadd.f32 %v1526, 1.0
    %v1528 = vrcp.pop %v1527
    %v1529 = vmul.f32 1.0, %v1528
    %v1530 = vtanh.pop %v1523
    %v1532 = vrot.slane %v1326, 6
    %v1534 = vmul.f32 %v1529, %v1532
    %1536 = vrot.lane.b32.xlu0 %v1530, 64
    %v1537 = vpop.permute.xlu0 %1536
    %v1539 = vmul.f32 %v1529, %v1537
    %1541 = vrot.lane.b32.xlu0 %v1539, 32
    %v1542 = vpop.permute.xlu0 %1541
    %v1544 = vadd.f32 %v1534, %v1542
    %v1545 = vtanh.pop %v1544
    %1547 = vrot.lane.b32.xlu0 %v1545, 64
    %v1548 = vpop.permute.xlu0 %1547
    %v1550 = vmul.f32 %v1529, %v1548
    %1552 = vrot.lane.b32.xlu0 %v1550, 32
    %v1553 = vpop.permute.xlu0 %1552
    %v1555 = vrot.slane %v1439, 4
    %1556 = vrot.lane.b32.xlu0 %v1555, 64
    %v1557 = vpop.permute.xlu0 %1556
    %v1559 = vsel %vm158, %v1553, %v1557
    %v1561 = vrot.slane %v1559, 4
    %v1562 = vsel %vm262, %v1561, 0
    %1564 = vmatprep.subr.mxu0 0.0
    %1565 = vmatpush1.msra.mxu0 %v47
    %1566 = vmatprep.subr.mxu0 0.0
    %1567 = vmatpush1.msra.mxu0 %v48
    %1568 = vmatprep.subr.mxu0 0.0
    %1569 = vmatpush1.msra.mxu0 %v49
    %1570 = vmatprep.subr.mxu0 0.0
    %1571 = vmatpush1.msra.mxu0 %v50
    %1572 = vmatprep.subr.mxu0 0.0
    %1573 = vmatpush1.msra.mxu0 %v51
    %1574 = vmatprep.subr.mxu0 0.0
    %1575 = vmatpush1.msra.mxu0 %v52
    %1576 = vmatprep.subr.mxu0 0.0
    %1577 = vmatpush1.msra.mxu0 %v53
    %1578 = vmatprep.subr.mxu0 0.0
    %1579 = vmatpush1.msra.mxu0 %v54
    %1580 = vmatprep.subr.mxu0 0.0
    %1581 = vmatpush1.msra.mxu0 0.0
    %1582 = vmatprep.subr.mxu0 0.0
    %1583 = vmatpush1.msra.mxu0 0.0
    %1584 = vmatprep.subr.mxu0 0.0
    %1585 = vmatpush1.msra.mxu0 0.0
    %1586 = vmatprep.subr.mxu0 0.0
    %1587 = vmatpush1.msra.mxu0 0.0
    %1588 = vmatprep.subr.mxu0 0.0
    %1589 = vmatpush1.msra.mxu0 0.0
    %1590 = vmatprep.subr.mxu0 0.0
    %1591 = vmatpush1.msra.mxu0 0.0
    %1592 = vmatprep.subr.mxu0 0.0
    %1593 = vmatpush1.msra.mxu0 0.0
    %1594 = vmatprep.subr.mxu0 0.0
    %1595 = vmatpush1.msra.mxu0 0.0
    %1596 = vmatprep.subr.mxu0 0.0
    %1597 = vmatpush1.msra.mxu0 0.0
    %1598 = vmatprep.subr.mxu0 0.0
    %1599 = vmatpush1.msra.mxu0 0.0
    %1600 = vmatprep.subr.mxu0 0.0
    %1601 = vmatpush1.msra.mxu0 0.0
    %1602 = vmatprep.subr.mxu0 0.0
    %1603 = vmatpush1.msra.mxu0 0.0
    %1604 = vmatprep.subr.mxu0 0.0
    %1605 = vmatpush1.msra.mxu0 0.0
    %1606 = vmatprep.subr.mxu0 0.0
    %1607 = vmatpush1.msra.mxu0 0.0
    %1608 = vmatprep.subr.mxu0 0.0
    %1609 = vmatpush1.msra.mxu0 0.0
    %1610 = vmatprep.subr.mxu0 0.0
    %1611 = vmatpush1.msra.mxu0 0.0
    %1612 = vmatprep.subr.mxu0 0.0
    %1613 = vmatpush1.msra.mxu0 0.0
    %1614 = vmatprep.subr.mxu0 0.0
    %1615 = vmatpush1.msra.mxu0 0.0
    %1616 = vmatprep.subr.mxu0 0.0
    %1617 = vmatpush1.msra.mxu0 0.0
    %1618 = vmatprep.subr.mxu0 0.0
    %1619 = vmatpush1.msra.mxu0 0.0
    %1620 = vmatprep.subr.mxu0 0.0
    %1621 = vmatpush1.msra.mxu0 0.0
    %1622 = vmatprep.subr.mxu0 0.0
    %1623 = vmatpush1.msra.mxu0 0.0
    %1624 = vmatprep.subr.mxu0 0.0
    %1625 = vmatpush1.msra.mxu0 0.0
    %1626 = vmatprep.subr.mxu0 0.0
    %1627 = vmatpush1.msra.mxu0 0.0
    %1628 = vmatprep.mubr.f32.mxu0 0.0
    %1629 = vmatmul.mubr.f32.gmra.mrb[0].mxu0 %v1562
    %v1630 = vpop.f32.mrb[0].mxu0
    %v1631 = vadd.f32 %v60, %v1630
    %v1632 = vpop.f32.mrb[0].mxu0
    %1633 = vdwg.mxu0
    %v1634 = vxor.u32 %v1631, 2147483648
    %v1635 = vmul.f32 %v1634, 1.442695
    %v1636 = vpow.pop %v1635
    %v1637 = vadd.f32 %v1636, 1.0
    %v1638 = vrcp.pop %v1637
    %v1639 = vmul.f32 1.0, %v1638
    %v1640 = vtanh.pop %v1631
    %v1641 = vmul.f32 %v1639, %v1433
    %1643 = vrot.lane.b32.xlu0 %v1640, 64
    %v1644 = vpop.permute.xlu0 %1643
    %v1646 = vmul.f32 %v1639, %v1644
    %1648 = vrot.lane.b32.xlu0 %v1646, 32
    %v1649 = vpop.permute.xlu0 %1648
    %v1651 = vadd.f32 %v1641, %v1649
    %v1652 = vtanh.pop %v1651
    %1654 = vrot.lane.b32.xlu0 %v1652, 64
    %v1655 = vpop.permute.xlu0 %1654
    %v1657 = vmul.f32 %v1639, %v1655
    %1659 = vrot.lane.b32.xlu0 %v1657, 32
    %v1660 = vpop.permute.xlu0 %1659
    %1662 = vst.msk [vmem:[#allocation2 + $0xc] sm:$0x3] %vm364, %v1660
    %v1663 = vrot.slane %v1550, 4
    %1664 = vrot.lane.b32.xlu0 %v1663, 32
    %v1665 = vpop.permute.xlu0 %1664
    %v1666 = vsel %vm158, %v1665, 0
    %1668 = vmatprep.subr.mxu0 0.0
    %1669 = vmatpush1.msra.mxu0 %v43
    %1670 = vmatprep.subr.mxu0 0.0
    %1671 = vmatpush1.msra.mxu0 %v44
    %1672 = vmatprep.subr.mxu0 0.0
    %1673 = vmatpush1.msra.mxu0 %v45
    %1674 = vmatprep.subr.mxu0 0.0
    %1675 = vmatpush1.msra.mxu0 %v46
    %1676 = vmatprep.subr.mxu0 0.0
    %1677 = vmatpush1.msra.mxu0 0.0
    %1678 = vmatprep.subr.mxu0 0.0
    %1679 = vmatpush1.msra.mxu0 0.0
    %1680 = vmatprep.subr.mxu0 0.0
    %1681 = vmatpush1.msra.mxu0 0.0
    %1682 = vmatprep.subr.mxu0 0.0
    %1683 = vmatpush1.msra.mxu0 0.0
    %1684 = vmatprep.subr.mxu0 0.0
    %1685 = vmatpush1.msra.mxu0 0.0
    %1686 = vmatprep.subr.mxu0 0.0
    %1687 = vmatpush1.msra.mxu0 0.0
    %1688 = vmatprep.subr.mxu0 0.0
    %1689 = vmatpush1.msra.mxu0 0.0
    %1690 = vmatprep.subr.mxu0 0.0
    %1691 = vmatpush1.msra.mxu0 0.0
    %1692 = vmatprep.subr.mxu0 0.0
    %1693 = vmatpush1.msra.mxu0 0.0
    %1694 = vmatprep.subr.mxu0 0.0
    %1695 = vmatpush1.msra.mxu0 0.0
    %1696 = vmatprep.subr.mxu0 0.0
    %1697 = vmatpush1.msra.mxu0 0.0
    %1698 = vmatprep.subr.mxu0 0.0
    %1699 = vmatpush1.msra.mxu0 0.0
    %1700 = vmatprep.subr.mxu0 0.0
    %1701 = vmatpush1.msra.mxu0 0.0
    %1702 = vmatprep.subr.mxu0 0.0
    %1703 = vmatpush1.msra.mxu0 0.0
    %1704 = vmatprep.subr.mxu0 0.0
    %1705 = vmatpush1.msra.mxu0 0.0
    %1706 = vmatprep.subr.mxu0 0.0
    %1707 = vmatpush1.msra.mxu0 0.0
    %1708 = vmatprep.subr.mxu0 0.0
    %1709 = vmatpush1.msra.mxu0 0.0
    %1710 = vmatprep.subr.mxu0 0.0
    %1711 = vmatpush1.msra.mxu0 0.0
    %1712 = vmatprep.subr.mxu0 0.0
    %1713 = vmatpush1.msra.mxu0 0.0
    %1714 = vmatprep.subr.mxu0 0.0
    %1715 = vmatpush1.msra.mxu0 0.0
    %1716 = vmatprep.subr.mxu0 0.0
    %1717 = vmatpush1.msra.mxu0 0.0
    %1718 = vmatprep.subr.mxu0 0.0
    %1719 = vmatpush1.msra.mxu0 0.0
    %1720 = vmatprep.subr.mxu0 0.0
    %1721 = vmatpush1.msra.mxu0 0.0
    %1722 = vmatprep.subr.mxu0 0.0
    %1723 = vmatpush1.msra.mxu0 0.0
    %1724 = vmatprep.subr.mxu0 0.0
    %1725 = vmatpush1.msra.mxu0 0.0
    %1726 = vmatprep.subr.mxu0 0.0
    %1727 = vmatpush1.msra.mxu0 0.0
    %1728 = vmatprep.subr.mxu0 0.0
    %1729 = vmatpush1.msra.mxu0 0.0
    %1730 = vmatprep.subr.mxu0 0.0
    %1731 = vmatpush1.msra.mxu0 0.0
    %1732 = vmatprep.mubr.f32.mxu0 0.0
    %1733 = vmatmul.mubr.f32.gmra.mrb[0].mxu0 %v1666
    %v1734 = vpop.f32.mrb[0].mxu0
    %v1735 = vadd.f32 0.0, %v1734
    %v1736 = vpop.f32.mrb[0].mxu0
    %1737 = vdwg.mxu0
    %v1739 = vrot.slane %v1735, 2
    %v1741 = vadd.f32 %v155, %v1739
    %v1742 = vxor.u32 %v1741, 2147483648
    %v1743 = vmul.f32 %v1742, 1.442695
    %v1744 = vpow.pop %v1743
    %v1745 = vadd.f32 %v1744, 1.0
    %v1746 = vrcp.pop %v1745
    %v1747 = vmul.f32 1.0, %v1746
    %v1748 = vtanh.pop %v1741
    %v1750 = vrot.slane %v1544, 6
    %v1752 = vmul.f32 %v1747, %v1750
    %1754 = vrot.lane.b32.xlu0 %v1748, 64
    %v1755 = vpop.permute.xlu0 %1754
    %v1757 = vmul.f32 %v1747, %v1755
    %1759 = vrot.lane.b32.xlu0 %v1757, 32
    %v1760 = vpop.permute.xlu0 %1759
    %v1762 = vadd.f32 %v1752, %v1760
    %v1763 = vtanh.pop %v1762
    %1765 = vrot.lane.b32.xlu0 %v1763, 64
    %v1766 = vpop.permute.xlu0 %1765
    %v1768 = vmul.f32 %v1747, %v1766
    %1770 = vrot.lane.b32.xlu0 %v1768, 32
    %v1771 = vpop.permute.xlu0 %1770
    %v1773 = vrot.slane %v1657, 2
    %1774 = vrot.lane.b32.xlu0 %v1773, 64
    %v1775 = vpop.permute.xlu0 %1774
    %v1777 = vsel %vm158, %v1771, %v1775
    %v1779 = vrot.slane %v1777, 6
    %v1780 = vsel %vm262, %v1779, 0
    %1782 = vmatprep.subr.mxu0 0.0
    %1783 = vmatpush1.msra.mxu0 %v47
    %1784 = vmatprep.subr.mxu0 0.0
    %1785 = vmatpush1.msra.mxu0 %v48
    %1786 = vmatprep.subr.mxu0 0.0
    %1787 = vmatpush1.msra.mxu0 %v49
    %1788 = vmatprep.subr.mxu0 0.0
    %1789 = vmatpush1.msra.mxu0 %v50
    %1790 = vmatprep.subr.mxu0 0.0
    %1791 = vmatpush1.msra.mxu0 %v51
    %1792 = vmatprep.subr.mxu0 0.0
    %1793 = vmatpush1.msra.mxu0 %v52
    %1794 = vmatprep.subr.mxu0 0.0
    %1795 = vmatpush1.msra.mxu0 %v53
    %1796 = vmatprep.subr.mxu0 0.0
    %1797 = vmatpush1.msra.mxu0 %v54
    %1798 = vmatprep.subr.mxu0 0.0
    %1799 = vmatpush1.msra.mxu0 0.0
    %1800 = vmatprep.subr.mxu0 0.0
    %1801 = vmatpush1.msra.mxu0 0.0
    %1802 = vmatprep.subr.mxu0 0.0
    %1803 = vmatpush1.msra.mxu0 0.0
    %1804 = vmatprep.subr.mxu0 0.0
    %1805 = vmatpush1.msra.mxu0 0.0
    %1806 = vmatprep.subr.mxu0 0.0
    %1807 = vmatpush1.msra.mxu0 0.0
    %1808 = vmatprep.subr.mxu0 0.0
    %1809 = vmatpush1.msra.mxu0 0.0
    %1810 = vmatprep.subr.mxu0 0.0
    %1811 = vmatpush1.msra.mxu0 0.0
    %1812 = vmatprep.subr.mxu0 0.0
    %1813 = vmatpush1.msra.mxu0 0.0
    %1814 = vmatprep.subr.mxu0 0.0
    %1815 = vmatpush1.msra.mxu0 0.0
    %1816 = vmatprep.subr.mxu0 0.0
    %1817 = vmatpush1.msra.mxu0 0.0
    %1818 = vmatprep.subr.mxu0 0.0
    %1819 = vmatpush1.msra.mxu0 0.0
    %1820 = vmatprep.subr.mxu0 0.0
    %1821 = vmatpush1.msra.mxu0 0.0
    %1822 = vmatprep.subr.mxu0 0.0
    %1823 = vmatpush1.msra.mxu0 0.0
    %1824 = vmatprep.subr.mxu0 0.0
    %1825 = vmatpush1.msra.mxu0 0.0
    %1826 = vmatprep.subr.mxu0 0.0
    %1827 = vmatpush1.msra.mxu0 0.0
    %1828 = vmatprep.subr.mxu0 0.0
    %1829 = vmatpush1.msra.mxu0 0.0
    %1830 = vmatprep.subr.mxu0 0.0
    %1831 = vmatpush1.msra.mxu0 0.0
    %1832 = vmatprep.subr.mxu0 0.0
    %1833 = vmatpush1.msra.mxu0 0.0
    %1834 = vmatprep.subr.mxu0 0.0
    %1835 = vmatpush1.msra.mxu0 0.0
    %1836 = vmatprep.subr.mxu0 0.0
    %1837 = vmatpush1.msra.mxu0 0.0
    %1838 = vmatprep.subr.mxu0 0.0
    %1839 = vmatpush1.msra.mxu0 0.0
    %1840 = vmatprep.subr.mxu0 0.0
    %1841 = vmatpush1.msra.mxu0 0.0
    %1842 = vmatprep.subr.mxu0 0.0
    %1843 = vmatpush1.msra.mxu0 0.0
    %1844 = vmatprep.subr.mxu0 0.0
    %1845 = vmatpush1.msra.mxu0 0.0
    %1846 = vmatprep.mubr.f32.mxu0 0.0
    %1847 = vmatmul.mubr.f32.gmra.mrb[0].mxu0 %v1780
    %v1848 = vpop.f32.mrb[0].mxu0
    %v1849 = vadd.f32 %v60, %v1848
    %v1850 = vpop.f32.mrb[0].mxu0
    %1851 = vdwg.mxu0
    %v1852 = vxor.u32 %v1849, 2147483648
    %v1853 = vmul.f32 %v1852, 1.442695
    %v1854 = vpow.pop %v1853
    %v1855 = vadd.f32 %v1854, 1.0
    %v1856 = vrcp.pop %v1855
    %v1857 = vmul.f32 1.0, %v1856
    %v1858 = vtanh.pop %v1849
    %v1859 = vmul.f32 %v1857, %v1651
    %1861 = vrot.lane.b32.xlu0 %v1858, 64
    %v1862 = vpop.permute.xlu0 %1861
    %v1864 = vmul.f32 %v1857, %v1862
    %1866 = vrot.lane.b32.xlu0 %v1864, 32
    %v1867 = vpop.permute.xlu0 %1866
    %v1869 = vadd.f32 %v1859, %v1867
    %v1870 = vtanh.pop %v1869
    %1872 = vrot.lane.b32.xlu0 %v1870, 64
    %v1873 = vpop.permute.xlu0 %1872
    %v1875 = vmul.f32 %v1857, %v1873
    %1877 = vrot.lane.b32.xlu0 %v1875, 32
    %v1878 = vpop.permute.xlu0 %1877
    %1880 = vst.msk [vmem:[#allocation2 + $0xe] sm:$0x3] %vm364, %v1878
    %v1881 = vld [vmem:[#allocation2] sm:$0xff]
    %v1882 = vld [vmem:[#allocation2 + $0x8] sm:$0xff]
    %v1883 = vld [vmem:[%s6] sm:$0xff]
    %v1884 = vld [vmem:[%s6 + $0x8] sm:$0xff]
    %v1885 = vld [vmem:[%s6 + $0x10] sm:$0xff]
    %v1886 = vld [vmem:[%s6 + $0x18] sm:$0xff]
    %v1887 = vld [vmem:[%s7] sm:$0x1]
    %v1889 = vlaneseq
    %v1890 = vshrl.u32 %v1889, 7
    %v1891 = vsub.s32 0, %v1890
    %v1892 = vrot.slane %v1887, %v1891
    %v1895 = vsel %vm158, %v1881, 0
    %v1898 = vsel %vm158, %v1882, 0
    %1900 = vmatprep.subr.mxu0 0.0
    %1901 = vmatpush1.msra.mxu0 %v1883
    %1902 = vmatprep.subr.mxu0 0.0
    %1903 = vmatpush1.msra.mxu0 %v1884
    %1904 = vmatprep.subr.mxu0 0.0
    %1905 = vmatpush1.msra.mxu0 %v1885
    %1906 = vmatprep.subr.mxu0 0.0
    %1907 = vmatpush1.msra.mxu0 %v1886
    %1908 = vmatprep.subr.mxu0 0.0
    %1909 = vmatpush1.msra.mxu0 0.0
    %1910 = vmatprep.subr.mxu0 0.0
    %1911 = vmatpush1.msra.mxu0 0.0
    %1912 = vmatprep.subr.mxu0 0.0
    %1913 = vmatpush1.msra.mxu0 0.0
    %1914 = vmatprep.subr.mxu0 0.0
    %1915 = vmatpush1.msra.mxu0 0.0
    %1916 = vmatprep.subr.mxu0 0.0
    %1917 = vmatpush1.msra.mxu0 0.0
    %1918 = vmatprep.subr.mxu0 0.0
    %1919 = vmatpush1.msra.mxu0 0.0
    %1920 = vmatprep.subr.mxu0 0.0
    %1921 = vmatpush1.msra.mxu0 0.0
    %1922 = vmatprep.subr.mxu0 0.0
    %1923 = vmatpush1.msra.mxu0 0.0
    %1924 = vmatprep.subr.mxu0 0.0
    %1925 = vmatpush1.msra.mxu0 0.0
    %1926 = vmatprep.subr.mxu0 0.0
    %1927 = vmatpush1.msra.mxu0 0.0
    %1928 = vmatprep.subr.mxu0 0.0
    %1929 = vmatpush1.msra.mxu0 0.0
    %1930 = vmatprep.subr.mxu0 0.0
    %1931 = vmatpush1.msra.mxu0 0.0
    %1932 = vmatprep.subr.mxu0 0.0
    %1933 = vmatpush1.msra.mxu0 0.0
    %1934 = vmatprep.subr.mxu0 0.0
    %1935 = vmatpush1.msra.mxu0 0.0
    %1936 = vmatprep.subr.mxu0 0.0
    %1937 = vmatpush1.msra.mxu0 0.0
    %1938 = vmatprep.subr.mxu0 0.0
    %1939 = vmatpush1.msra.mxu0 0.0
    %1940 = vmatprep.subr.mxu0 0.0
    %1941 = vmatpush1.msra.mxu0 0.0
    %1942 = vmatprep.subr.mxu0 0.0
    %1943 = vmatpush1.msra.mxu0 0.0
    %1944 = vmatprep.subr.mxu0 0.0
    %1945 = vmatpush1.msra.mxu0 0.0
    %1946 = vmatprep.subr.mxu0 0.0
    %1947 = vmatpush1.msra.mxu0 0.0
    %1948 = vmatprep.subr.mxu0 0.0
    %1949 = vmatpush1.msra.mxu0 0.0
    %1950 = vmatprep.subr.mxu0 0.0
    %1951 = vmatpush1.msra.mxu0 0.0
    %1952 = vmatprep.subr.mxu0 0.0
    %1953 = vmatpush1.msra.mxu0 0.0
    %1954 = vmatprep.subr.mxu0 0.0
    %1955 = vmatpush1.msra.mxu0 0.0
    %1956 = vmatprep.subr.mxu0 0.0
    %1957 = vmatpush1.msra.mxu0 0.0
    %1958 = vmatprep.subr.mxu0 0.0
    %1959 = vmatpush1.msra.mxu0 0.0
    %1960 = vmatprep.subr.mxu0 0.0
    %1961 = vmatpush1.msra.mxu0 0.0
    %1962 = vmatprep.subr.mxu0 0.0
    %1963 = vmatpush1.msra.mxu0 0.0
    %1964 = vmatprep.mubr.f32.mxu0 0.0
    %1965 = vmatmul.mubr.f32.gmra.mrb[0].mxu0 %v1895
    %v1966 = vpop.f32.mrb[0].mxu0
    %v1967 = vadd.f32 %v1892, %v1966
    %v1968 = vpop.f32.mrb[0].mxu0
    %1969 = vmatprep.mubr.f32.mxu0 0.0
    %1970 = vmatmul.mubr.f32.gmra.mrb[0].mxu0 %v1898
    %v1971 = vpop.f32.mrb[0].mxu0
    %v1972 = vadd.f32 %v1892, %v1971
    %v1973 = vpop.f32.mrb[0].mxu0
    %1974 = vdwg.mxu0
    %1975 = vst.msk [vmem:[%s8] sm:$0xff] %vm72, %v1967
    %1976 = vst.msk [vmem:[%s8 + $0x8] sm:$0xff] %vm72, %v1972
    // Predicated region
    $region38: #{tpu_custom_call.1} parent=1 // pred_check
      _
    $region39: #{tpu_custom_call.1} parent=1 // pred_check_branch
      %1978 = sbr.rel (0) target = $region41
    $region40: #{tpu_custom_call.1} parent=1 // pred_region
      _
    $region41: #{tpu_custom_call.1} parent=1 // pred_fallthru
      _
    // Predicated region
    $region42: #{tpu_custom_call.1} parent=1 // pred_check
      _
    $region43: #{tpu_custom_call.1} parent=1 // pred_check_branch
      %1980 = sbr.rel (0) target = $region45
    $region44: #{tpu_custom_call.1} parent=1 // pred_region
      _
    $region45: #{tpu_custom_call.1} parent=1 // pred_fallthru
      _
    %1981 = vsyncpa [#allocation4], 1

</llo_original>
